<compile_context>
chip_gen: v6e
topology: v6e:2x2x1
jax: 0.10.0
libtpu: 0.0.40
codegen_flags: <defaults>
</compile_context>

<pallas_src>
import functools
import math

import jax
import jax.numpy as jnp
from jax import lax
from jax.experimental import pallas as pl
from jax.experimental.pallas import tpu as pltpu


# ---------------------------------------------------------------------------
# Fused kernel: in-VMEM taps + MXU matmul(s), f32 accumulation, bias, cast.
# ---------------------------------------------------------------------------
def _fused_dw_bn_pw_kernel(xq_ref, w_ref, b_ref, o_ref, *, stride, ksize, th,
                           wo, cin):
    # xq_ref : (s*s, Hq, Wq, C)    bf16  phase-decomposed padded input (batch b)
    # w_ref  : (k*k*C, Cout_p)     bf16  folded depthwise * BN * pointwise weight
    # b_ref  : (1, Cout_p)         f32   folded bias
    # o_ref  : (1, th*wo, Cout_p)        output rows [r0, r0+th) of batch b
    s, k = stride, ksize
    r0 = pl.multiple_of(pl.program_id(1) * th, th)

    def tap(m):                                       # (th, wo, C)
        di, dj = m // k, m % k
        pi, oi = di % s, di // s
        pj, oj = dj % s, dj // s
        return xq_ref[pi * s + pj, pl.ds(r0 + oi, th), oj:oj + wo, :]

    cout_p = o_ref.shape[-1]
    if cin >= 128:
        # Big C: split-K sum of k*k matmuls; skips the concat relayout + the
        # (th*wo, k*k*C) staging buffer while keeping the MXU fed (K = C).
        acc = jnp.zeros((th * wo, cout_p), jnp.float32)
        for m in range(k * k):
            t = tap(m).reshape(th * wo, cin)
            acc = acc + jnp.dot(t, w_ref[m * cin:(m + 1) * cin, :],
                                preferred_element_type=jnp.float32)
    else:
        # Small C: one big-K matmul from an in-VMEM im2col concat.
        t_all = jnp.concatenate([tap(m) for m in range(k * k)], axis=-1)
        t_all = t_all.reshape(th * wo, k * k * cin)
        acc = jnp.dot(t_all, w_ref[...], preferred_element_type=jnp.float32)

    o_ref[0] = (acc + b_ref[...]).astype(o_ref.dtype)


def _phase_decompose(x_nhwc, ksize, pad, stride, ho_pad, wo):
    """Zero-pad and split into stride*stride spatial phases so every conv tap
    becomes a plain slice inside the kernel. Returns (B*s*s, Hq, Wq, C)."""
    B, H, W, C = x_nhwc.shape
    s = stride
    q = -(-ksize // s)                                    # ceil(k / s)
    Hq, Wq = ho_pad - 1 + q, wo - 1 + q
    xp = jnp.pad(x_nhwc.astype(jnp.bfloat16),
                 ((0, 0),
                  (pad, max(0, s * Hq - H - pad)),
                  (pad, max(0, s * Wq - W - pad)),
                  (0, 0)))
    xp = xp[:, :s * Hq, :s * Wq, :]      # rows/cols beyond this are never read
    if s == 1:                           # stride 1: decomposition is identity
        return xp, Hq, Wq
    # phase[b, pi, pj, i, j, c] == padded_x[b, s*i + pi, s*j + pj, c]
    xq = xp.reshape(B, Hq, s, Wq, s, C).transpose(0, 2, 4, 1, 3, 5)
    return xq.reshape(B * s * s, Hq, Wq, C), Hq, Wq


@functools.partial(jax.jit,
                   static_argnames=("kernel_size", "padding", "stride", "eps",
                                    "out_dtype"))
def depthwise_conv2d_forward(x_nchw, p, *, kernel_size, padding, stride,
                             eps=1e-5, out_dtype=jnp.bfloat16):
    """DepthWiseConv2d.forward: NCHW in -> NCHW out (PyTorch layout).

    out_dtype defaults to bf16 (per perf review) to halve output HBM traffic;
    pass jnp.float32 for exact PyTorch output dtype."""
    B, C, H, W = x_nchw.shape
    k, s = kernel_size, stride
    kk = k * k
    Cout = p['pw_w'].shape[1]
    Ho = (H + 2 * padding - k) // s + 1
    Wo = (W + 2 * padding - k) // s + 1

    # ---- fold depthwise conv + BatchNorm(eval) + 1x1 conv into one matmul ----
    scale = p['bn_gamma'] * lax.rsqrt(p['bn_var'] + eps)             # (C,)
    shift = p['bn_beta'] - p['bn_mean'] * scale                      # (C,)
    w_fused = (p['dw_w'].reshape(kk, C, 1)
               * scale.reshape(1, C, 1)
               * p['pw_w'].reshape(1, C, Cout)).reshape(kk * C, Cout)
    b_fused = (p['dw_b'] * scale + shift) @ p['pw_w'] + p['pw_b']    # (Cout,)

    # Lane-dense output: pad Cout up to 128 when narrower -> unmasked stores.
    Cout_p = 128 if Cout < 128 else Cout
    if Cout_p != Cout:
        w_fused = jnp.pad(w_fused, ((0, 0), (0, Cout_p - Cout)))
        b_fused = jnp.pad(b_fused, (0, Cout_p - Cout))
    w_fused = w_fused.astype(jnp.bfloat16)
    b_fused = b_fused.reshape(1, Cout_p).astype(jnp.float32)

    # ---- row tiling: th*Wo multiple of 16, targeting M ~= 512; pad Ho so a
    # ---- non-divisible shape never collapses to one whole-image block.
    th_unit = 16 // math.gcd(Wo, 16)
    target_rows = max(1, 512 // max(Wo, 1))
    th = max(th_unit, (target_rows // th_unit) * th_unit)
    th = min(th, -(-Ho // th_unit) * th_unit)
    n_tiles = -(-Ho // th)
    Ho_pad = n_tiles * th

    # ---- phase-decomposed padded input (~1x size, no k*k im2col in HBM) ------
    x_nhwc = jnp.transpose(x_nchw, (0, 2, 3, 1))                     # NCHW->NHWC
    xq, Hq, Wq = _phase_decompose(x_nhwc, k, padding, s, Ho_pad, Wo)

    # ---- explicit VMEM budget (double-buffered blocks + compute staging) -----
    out_isize = jnp.dtype(out_dtype).itemsize
    xq_blk = s * s * Hq * Wq * C * 2
    w_blk = kk * C * Cout_p * 2
    b_blk = Cout_p * 4
    out_blk = th * Wo * Cout_p * out_isize
    scratch = th * Wo * kk * C * 2 + th * Wo * Cout_p * 4
    vmem_need = 2 * (xq_blk + w_blk + b_blk + out_blk) + scratch
    vmem_limit = int(min(64 * 2**20, max(16 * 2**20, 2 * vmem_need)))

    cost = pl.CostEstimate(
        flops=2 * B * Ho * Wo * kk * C * Cout_p,
        transcendentals=0,
        bytes_accessed=B * (xq_blk + n_tiles * out_blk) + w_blk + b_blk)

    out_flat = pl.pallas_call(
        functools.partial(_fused_dw_bn_pw_kernel,
                          stride=s, ksize=k, th=th, wo=Wo, cin=C),
        out_shape=jax.ShapeDtypeStruct((B, Ho_pad * Wo, Cout_p), out_dtype),
        grid=(B, n_tiles),
        in_specs=[
            # full per-batch phase tensor; index constant in t -> DMA'd once/batch
            pl.BlockSpec((s * s, Hq, Wq, C), lambda b, t: (b, 0, 0, 0)),
            pl.BlockSpec((kk * C, Cout_p), lambda b, t: (0, 0)),
            pl.BlockSpec((1, Cout_p), lambda b, t: (0, 0)),
        ],
        out_specs=pl.BlockSpec((1, th * Wo, Cout_p), lambda b, t: (b, t, 0)),
        compiler_params=pltpu.CompilerParams(
            dimension_semantics=("parallel", "parallel"),
            vmem_limit_bytes=vmem_limit),
        cost_estimate=cost,
    )(xq, w_fused, b_fused)

    out = out_flat.reshape(B, Ho_pad, Wo, Cout_p)[:, :Ho, :, :Cout]
    return jnp.transpose(out, (0, 3, 1, 2))                         # NHWC->NCHW


# ---------------------------------------------------------------------------
# Deterministic parameter init (shapes from DepthWiseConv2d.__init__)
# ---------------------------------------------------------------------------
def init_params(key, dim_in, dim_out, kernel_size):
    k = kernel_size
    ks = jax.random.split(key, 8)

    def n(kk, shape, s=0.2):
        return s * jax.random.normal(kk, shape, jnp.float32)

    return {
        'dw_w': n(ks[0], (k, k, dim_in)),             # depthwise conv weight
        'dw_b': n(ks[1], (dim_in,), 0.1),             # depthwise conv bias
        'bn_gamma': 1.0 + 0.1 * jax.random.normal(ks[2], (dim_in,), jnp.float32),
        'bn_beta': 0.1 * jax.random.normal(ks[3], (dim_in,), jnp.float32),
        'bn_mean': 0.1 * jax.random.normal(ks[4], (dim_in,), jnp.float32),
        'bn_var': jax.random.uniform(ks[5], (dim_in,), jnp.float32, 0.5, 1.5),
        'pw_w': n(ks[6], (dim_in, dim_out)),          # 1x1 conv weight
        'pw_b': n(ks[7], (dim_out,), 0.1),            # 1x1 conv bias
    }


# ---------------------------------------------------------------------------
# Pure-JAX f32 reference (matches the PyTorch module in eval mode)
# ---------------------------------------------------------------------------
def ref_forward(x_nchw, p, *, kernel_size, padding, stride, eps=1e-5):
    B, C, H, W = x_nchw.shape
    k = kernel_size
    hp = lax.Precision.HIGHEST
    x = jnp.transpose(x_nchw, (0, 2, 3, 1))
    y = lax.conv_general_dilated(
        x, p['dw_w'].reshape(k, k, 1, C), (stride, stride),
        ((padding, padding), (padding, padding)),
        dimension_numbers=('NHWC', 'HWIO', 'NHWC'),
        feature_group_count=C, precision=hp) + p['dw_b']
    scale = p['bn_gamma'] / jnp.sqrt(p['bn_var'] + eps)
    y = (y - p['bn_mean']) * scale + p['bn_beta']
    y = jnp.einsum('bhwc,co->bhwo', y, p['pw_w'], precision=hp) + p['pw_b']
    return jnp.transpose(y, (0, 3, 1, 2))


if __name__ == "__main__":
    B, H, W = 2, 16, 16
    kernel_size, padding = 3, 1
    key = jax.random.PRNGKey(0)

    # (dim_in, dim_out, stride): small-C concat path (stride 1 & 2, CvT q/kv
    # projections) and the C>=128 split-K matmul-accumulation path.
    configs = [(32, 64, 1), (32, 64, 2), (128, 128, 2)]

    for dim_in, dim_out, stride in configs:
        key, kx, kp = jax.random.split(key, 3)
        x = jax.random.normal(kx, (B, dim_in, H, W), jnp.float32)   # NCHW input
        params = init_params(kp, dim_in, dim_out, kernel_size)

        Ho = (H + 2 * padding - kernel_size) // stride + 1
        Wo = (W + 2 * padding - kernel_size) // stride + 1

        out = depthwise_conv2d_forward(x, params, kernel_size=kernel_size,
                                       padding=padding, stride=stride)
        out = jax.block_until_ready(out)

        assert out.shape == (B, dim_out, Ho, Wo), out.shape
        assert bool(jnp.all(jnp.isfinite(out))), "non-finite output"

        ref = ref_forward(x, params, kernel_size=kernel_size,
                          padding=padding, stride=stride)
        err = float(jnp.max(jnp.abs(out.astype(jnp.float32) - ref)))
        tol = 2e-2 * max(1.0, float(jnp.max(jnp.abs(ref))))   # bf16 MXU + bf16 out
        assert err <= tol, (f"C={dim_in} Cout={dim_out} stride={stride}: "
                            f"max abs err {err} > tol {tol}")

    print("KERNEL_OK")
</pallas_src>

<mosaic_0001>
module attributes {stable_mosaic.version = 11 : i64} {
  func.func @_fused_dw_bn_pw_kernel(%arg0: i32, %arg1: i32, %arg2: memref<1x18x18x32xbf16, #tpu.memory_space<vmem>>, %arg3: memref<288x128xbf16, #tpu.memory_space<vmem>>, %arg4: memref<1x128xf32, #tpu.memory_space<vmem>>, %arg5: memref<1x256x128xbf16, #tpu.memory_space<vmem>>) attributes {dimension_semantics = [#tpu.dimension_semantics<parallel>, #tpu.dimension_semantics<parallel>], iteration_bounds = array<i64: 2, 1>, scalar_prefetch = 0 : i64, scratch_operands = 0 : i64, tpu.core_type = #tpu.core_type<tc>, window_params = [{transform_indices = @transform_0, window_bounds = array<i64: 1, 18, 18, 32>}, {pipeline_mode = #tpu.pipeline_mode<synchronous>, transform_indices = @transform_1, window_bounds = array<i64: 288, 128>}, {pipeline_mode = #tpu.pipeline_mode<synchronous>, transform_indices = @transform_2, window_bounds = array<i64: 1, 128>}, {transform_indices = @transform_3, window_bounds = array<i64: 1, 256, 128>}]} {
    %c16_i32 = arith.constant 16 : i32
    %0 = arith.muli %arg1, %c16_i32 : i32
    %1 = tpu.assume_multiple %0, 16 : i32
    %c0_i32 = arith.constant 0 : i32
    %2 = arith.addi %1, %c0_i32 : i32
    %c0 = arith.constant 0 : index
    %3 = arith.index_cast %2 : i32 to index
    %c0_0 = arith.constant 0 : index
    %c0_1 = arith.constant 0 : index
    %4 = vector.load %arg2[%c0, %3, %c0_0, %c0_1] : memref<1x18x18x32xbf16, #tpu.memory_space<vmem>>, vector<1x16x16x32xbf16>
    %5 = vector.shape_cast %4 : vector<1x16x16x32xbf16> to vector<16x16x32xbf16>
    %c0_i32_2 = arith.constant 0 : i32
    %6 = arith.addi %1, %c0_i32_2 : i32
    %c0_3 = arith.constant 0 : index
    %7 = arith.index_cast %6 : i32 to index
    %c1 = arith.constant 1 : index
    %c0_4 = arith.constant 0 : index
    %8 = vector.load %arg2[%c0_3, %7, %c1, %c0_4] : memref<1x18x18x32xbf16, #tpu.memory_space<vmem>>, vector<1x16x16x32xbf16>
    %9 = vector.shape_cast %8 : vector<1x16x16x32xbf16> to vector<16x16x32xbf16>
    %c0_i32_5 = arith.constant 0 : i32
    %10 = arith.addi %1, %c0_i32_5 : i32
    %c0_6 = arith.constant 0 : index
    %11 = arith.index_cast %10 : i32 to index
    %c2 = arith.constant 2 : index
    %c0_7 = arith.constant 0 : index
    %12 = vector.load %arg2[%c0_6, %11, %c2, %c0_7] : memref<1x18x18x32xbf16, #tpu.memory_space<vmem>>, vector<1x16x16x32xbf16>
    %13 = vector.shape_cast %12 : vector<1x16x16x32xbf16> to vector<16x16x32xbf16>
    %c1_i32 = arith.constant 1 : i32
    %14 = arith.addi %1, %c1_i32 : i32
    %c0_8 = arith.constant 0 : index
    %15 = arith.index_cast %14 : i32 to index
    %c0_9 = arith.constant 0 : index
    %c0_10 = arith.constant 0 : index
    %16 = vector.load %arg2[%c0_8, %15, %c0_9, %c0_10] : memref<1x18x18x32xbf16, #tpu.memory_space<vmem>>, vector<1x16x16x32xbf16>
    %17 = vector.shape_cast %16 : vector<1x16x16x32xbf16> to vector<16x16x32xbf16>
    %c1_i32_11 = arith.constant 1 : i32
    %18 = arith.addi %1, %c1_i32_11 : i32
    %c0_12 = arith.constant 0 : index
    %19 = arith.index_cast %18 : i32 to index
    %c1_13 = arith.constant 1 : index
    %c0_14 = arith.constant 0 : index
    %20 = vector.load %arg2[%c0_12, %19, %c1_13, %c0_14] : memref<1x18x18x32xbf16, #tpu.memory_space<vmem>>, vector<1x16x16x32xbf16>
    %21 = vector.shape_cast %20 : vector<1x16x16x32xbf16> to vector<16x16x32xbf16>
    %c1_i32_15 = arith.constant 1 : i32
    %22 = arith.addi %1, %c1_i32_15 : i32
    %c0_16 = arith.constant 0 : index
    %23 = arith.index_cast %22 : i32 to index
    %c2_17 = arith.constant 2 : index
    %c0_18 = arith.constant 0 : index
    %24 = vector.load %arg2[%c0_16, %23, %c2_17, %c0_18] : memref<1x18x18x32xbf16, #tpu.memory_space<vmem>>, vector<1x16x16x32xbf16>
    %25 = vector.shape_cast %24 : vector<1x16x16x32xbf16> to vector<16x16x32xbf16>
    %c2_i32 = arith.constant 2 : i32
    %26 = arith.addi %1, %c2_i32 : i32
    %c0_19 = arith.constant 0 : index
    %27 = arith.index_cast %26 : i32 to index
    %c0_20 = arith.constant 0 : index
    %c0_21 = arith.constant 0 : index
    %28 = vector.load %arg2[%c0_19, %27, %c0_20, %c0_21] : memref<1x18x18x32xbf16, #tpu.memory_space<vmem>>, vector<1x16x16x32xbf16>
    %29 = vector.shape_cast %28 : vector<1x16x16x32xbf16> to vector<16x16x32xbf16>
    %c2_i32_22 = arith.constant 2 : i32
    %30 = arith.addi %1, %c2_i32_22 : i32
    %c0_23 = arith.constant 0 : index
    %31 = arith.index_cast %30 : i32 to index
    %c1_24 = arith.constant 1 : index
    %c0_25 = arith.constant 0 : index
    %32 = vector.load %arg2[%c0_23, %31, %c1_24, %c0_25] : memref<1x18x18x32xbf16, #tpu.memory_space<vmem>>, vector<1x16x16x32xbf16>
    %33 = vector.shape_cast %32 : vector<1x16x16x32xbf16> to vector<16x16x32xbf16>
    %c2_i32_26 = arith.constant 2 : i32
    %34 = arith.addi %1, %c2_i32_26 : i32
    %c0_27 = arith.constant 0 : index
    %35 = arith.index_cast %34 : i32 to index
    %c2_28 = arith.constant 2 : index
    %c0_29 = arith.constant 0 : index
    %36 = vector.load %arg2[%c0_27, %35, %c2_28, %c0_29] : memref<1x18x18x32xbf16, #tpu.memory_space<vmem>>, vector<1x16x16x32xbf16>
    %37 = vector.shape_cast %36 : vector<1x16x16x32xbf16> to vector<16x16x32xbf16>
    %38 = tpu.concatenate %5, %9, %13, %17, %21, %25, %29, %33, %37 in 2 : vector<16x16x32xbf16>, vector<16x16x32xbf16>, vector<16x16x32xbf16>, vector<16x16x32xbf16>, vector<16x16x32xbf16>, vector<16x16x32xbf16>, vector<16x16x32xbf16>, vector<16x16x32xbf16>, vector<16x16x32xbf16> -> vector<16x16x288xbf16>
    %39 = vector.shape_cast %38 : vector<16x16x288xbf16> to vector<256x288xbf16>
    %c0_30 = arith.constant 0 : index
    %c0_31 = arith.constant 0 : index
    %40 = vector.load %arg3[%c0_30, %c0_31] : memref<288x128xbf16, #tpu.memory_space<vmem>>, vector<288x128xbf16>
    %cst = arith.constant dense<0.000000e+00> : vector<256x128xf32>
    %41 = tpu.matmul %39, %40, %cst {dimension_numbers = #tpu.dot_dimension_numbers<[1], [0], [0], [1], [0, 0, 1, 1], [], []>} : vector<256x288xbf16>, vector<288x128xbf16>, vector<256x128xf32> -> vector<256x128xf32>
    %c0_32 = arith.constant 0 : index
    %c0_33 = arith.constant 0 : index
    %42 = vector.load %arg4[%c0_32, %c0_33] : memref<1x128xf32, #tpu.memory_space<vmem>>, vector<1x128xf32>
    %43 = vector.broadcast %42 : vector<1x128xf32> to vector<256x128xf32>
    %44 = arith.addf %41, %43 : vector<256x128xf32>
    %45 = arith.truncf %44 : vector<256x128xf32> to vector<256x128xbf16>
    %c0_34 = arith.constant 0 : index
    %c0_35 = arith.constant 0 : index
    %c0_36 = arith.constant 0 : index
    %46 = vector.load %arg5[%c0_34, %c0_35, %c0_36] : memref<1x256x128xbf16, #tpu.memory_space<vmem>>, vector<1x256x128xbf16>
    %47 = vector.shape_cast %46 : vector<1x256x128xbf16> to vector<256x128xbf16>
    %48 = vector.shape_cast %45 : vector<256x128xbf16> to vector<1x256x128xbf16>
    tpu.vector_store %arg5[%c0_34, %c0_35, %c0_36], %48 {strides = array<i32>} : memref<1x256x128xbf16, #tpu.memory_space<vmem>>, vector<1x256x128xbf16>,
    return
  }
  func.func @transform_0(%arg0: i32, %arg1: i32) -> (i32, i32, i32, i32) {
    %c0_i32 = arith.constant 0 : i32
    %c0_i32_0 = arith.constant 0 : i32
    %c0_i32_1 = arith.constant 0 : i32
    %c0_i32_2 = arith.constant 0 : i32
    return %arg0, %c0_i32, %c0_i32_0, %c0_i32_1 : i32, i32, i32, i32
  }
  func.func @transform_1(%arg0: i32, %arg1: i32) -> (i32, i32) {
    %c0_i32 = arith.constant 0 : i32
    %c0_i32_0 = arith.constant 0 : i32
    %c0_i32_1 = arith.constant 0 : i32
    return %c0_i32, %c0_i32_0 : i32, i32
  }
  func.func @transform_2(%arg0: i32, %arg1: i32) -> (i32, i32) {
    %c0_i32 = arith.constant 0 : i32
    %c0_i32_0 = arith.constant 0 : i32
    %c0_i32_1 = arith.constant 0 : i32
    return %c0_i32, %c0_i32_0 : i32, i32
  }
  func.func @transform_3(%arg0: i32, %arg1: i32) -> (i32, i32, i32) {
    %c0_i32 = arith.constant 0 : i32
    %c0_i32_0 = arith.constant 0 : i32
    return %arg0, %arg1, %c0_i32 : i32, i32, i32
  }
}

</mosaic_0001>

<llo_original>
// kernel: mul.5
$region0: #{mul.5}
  #allocation0 [shape = 's32[1]{0}', space=sflag, size = 0x4, scoped, tag = 'scoped memory for mul.5']
  %s0 = inlined_call_operand.vmem [shape: f32[288], index: 0, kind: input, shape index: {}]
  %s1 = inlined_call_operand.vmem [shape: f32[288], index: 1, kind: input, shape index: {}]
  %s2 = inlined_call_operand.vmem [shape: f32[288], index: 2, kind: output, shape index: {}]
  %v3 = vld [vmem:[%s0] sm:$0x7]
  %v4 = vld [vmem:[%s1] sm:$0x7]
  %5 = xla_tuple %v3, %v4
  %6 = xla_tuple %5
  %v7 = vmul.f32 %v3, %v4
  %8 = xla_tuple %v7
  %9 = vst [vmem:[%s2] sm:$0xf] %v7

// kernel: depthwise_conv2d_forward.1
$region0: #{depthwise_conv2d_forward.1}
  #allocation0 [shape = 'u32[]', space=smem, size = 0x4, offset = 0x4, fixed_abs, tag = 'smem constant byte address 0x4 - core index']
  #allocation1 [shape = 'u32[144,128]{1,0:T(1,128)}', space=vmem, size = 0x12000, scoped, tag = 'internal scratch']
  %s0 = inlined_call_operand.vmem [shape: bf16[2,18,18,32], index: 0, kind: input, shape index: {}]
  %s1 = inlined_call_operand.vmem [shape: bf16[288,128], index: 1, kind: input, shape index: {}]
  %s2 = inlined_call_operand.vmem [shape: f32[1,128], index: 2, kind: input, shape index: {}]
  %s3 = inlined_call_operand.vmem [shape: bf16[2,256,128], index: 3, kind: output, shape index: {}]
  %s4 = sld [smem:[#allocation0]]
  $region45: #{depthwise_conv2d_forward.1} parent=0
    _
  %s6 = ssub.s32 1, %s4
  %s7 = scalar_select 0, %s6, %s4
  loop: start=0, step=1, limit=4
  $region2: #{depthwise_conv2d_forward.1} parent=0 // loop_pre_header
    _
  $region3: #{depthwise_conv2d_forward.1} parent=0 // loop_header
    %s9 = sphi 0, %s13
    %p10 = scmp.ge.s32.totalorder %s9, 4
    %s16 = sphi 0, %s28
    %s17 = sphi 0, %s24
    %s18 = sphi 0, %s16
    %s19 = sphi 0, %s17
    %s20 = sphi 0, %s18
    %s21 = sphi 0, %s19
    %s31 = sphi 0, %s33
    %s34 = sphi 0, %s31
    %s35 = sphi 0, %s34
    %s51 = sphi 0, %s35
    %s55 = sphi 0, %s55
    %s57 = sphi 0, %s55
    %s58 = sphi 0, %s57
    %s72 = sphi 0, %s58
    %s76 = sphi 0, %s76
    %s78 = sphi 0, %s76
    %s79 = sphi 0, %s78
    %s93 = sphi 0, %s79
    %s101 = sphi 0, %s103
    %s104 = sphi 0, %s101
    %s105 = sphi 0, %s104
    %s121 = sphi 0, %s105
  $region4: #{depthwise_conv2d_forward.1} parent=0 // loop_header_branch
    %12 = sbr.rel (%p10) target = $region8
  $region5: #{depthwise_conv2d_forward.1} parent=0 // loop_body
    %s14 = ssub.s32 %s9, 1
    %s15 = ssub.s32 %s9, 2
    %s22 = sadd.s32 1, %s17
    %p23 = scmp.ge.s32.totalorder %s22, 1
    %s24 = scalar_select %p23, 0, %s22
    %s25 = sadd.s32 1, %s16
    %s26 = scalar_select %p23, %s25, %s16
    %p27 = scmp.ge.s32.totalorder %s26, 2
    %s28 = scalar_select %p27, 0, %s26
    %s29 = ssub.s32 %s16, %s28
    %p30 = scmp.eq.s32.totalorder %s29, 0
    %s32 = sadd.s32 %s31, 1
    %s33 = scalar_select %p30, %s31, %s32
    %p36 = pneg %p30
    %p37 = scmp.eq.s32.totalorder %s9, 1
    %p38 = por %p36, %p37
    %p39 = scmp.ne.s32.totalorder %s31, %s34
    %p40 = scmp.eq.s32.totalorder %s9, 0
    %p41 = por %p39, %p40
    %p42 = scmp.ne.s32.totalorder %s31, %s34
    %p43 = scmp.eq.s32.totalorder %s14, 1
    %p44 = por %p42, %p43
    %p45 = scmp.ne.s32.totalorder %s34, %s35
    %p46 = scmp.eq.s32.totalorder %s14, 0
    %p47 = por %p45, %p46
    %p48 = scmp.ne.s32.totalorder %s34, %s35
    %p49 = scmp.eq.s32.totalorder %s15, 1
    %p50 = por %p48, %p49
    %p52 = scmp.ne.s32.totalorder %s35, %s51
    %p53 = scmp.eq.s32.totalorder %s15, 0
    %p54 = por %p52, %p53
    %s56 = sadd.s32 %s55, 1
    %p59 = scmp.eq.s32.totalorder %s9, 1
    %p60 = scmp.ne.s32.totalorder %s55, %s57
    %p61 = scmp.eq.s32.totalorder %s9, 0
    %p62 = por %p60, %p61
    %p63 = scmp.ne.s32.totalorder %s55, %s57
    %p64 = scmp.eq.s32.totalorder %s14, 1
    %p65 = por %p63, %p64
    %p66 = scmp.ne.s32.totalorder %s57, %s58
    %p67 = scmp.eq.s32.totalorder %s14, 0
    %p68 = por %p66, %p67
    %p69 = scmp.ne.s32.totalorder %s57, %s58
    %p70 = scmp.eq.s32.totalorder %s15, 1
    %p71 = por %p69, %p70
    %p73 = scmp.ne.s32.totalorder %s58, %s72
    %p74 = scmp.eq.s32.totalorder %s15, 0
    %p75 = por %p73, %p74
    %s77 = sadd.s32 %s76, 1
    %p80 = scmp.eq.s32.totalorder %s9, 1
    %p81 = scmp.ne.s32.totalorder %s76, %s78
    %p82 = scmp.eq.s32.totalorder %s9, 0
    %p83 = por %p81, %p82
    %p84 = scmp.ne.s32.totalorder %s76, %s78
    %p85 = scmp.eq.s32.totalorder %s14, 1
    %p86 = por %p84, %p85
    %p87 = scmp.ne.s32.totalorder %s78, %s79
    %p88 = scmp.eq.s32.totalorder %s14, 0
    %p89 = por %p87, %p88
    %p90 = scmp.ne.s32.totalorder %s78, %s79
    %p91 = scmp.eq.s32.totalorder %s15, 1
    %p92 = por %p90, %p91
    %p94 = scmp.ne.s32.totalorder %s79, %s93
    %p95 = scmp.eq.s32.totalorder %s15, 0
    %p96 = por %p94, %p95
    %s97 = ssub.s32 %s16, %s28
    %s98 = ssub.s32 %s17, %s24
    %s99 = sor.u32 %s97, %s98
    %p100 = scmp.eq.s32.totalorder %s99, 0
    %s102 = sadd.s32 %s101, 1
    %s103 = scalar_select %p100, %s101, %s102
    %p106 = pneg %p100
    %p107 = scmp.eq.s32.totalorder %s9, 1
    %p108 = por %p106, %p107
    %p109 = scmp.ne.s32.totalorder %s101, %s104
    %p110 = scmp.eq.s32.totalorder %s9, 0
    %p111 = por %p109, %p110
    %p112 = scmp.ne.s32.totalorder %s101, %s104
    %p113 = scmp.eq.s32.totalorder %s14, 1
    %p114 = por %p112, %p113
    %p115 = scmp.ne.s32.totalorder %s104, %s105
    %p116 = scmp.eq.s32.totalorder %s14, 0
    %p117 = por %p115, %p116
    %p118 = scmp.ne.s32.totalorder %s104, %s105
    %p119 = scmp.eq.s32.totalorder %s15, 1
    %p120 = por %p118, %p119
    %p122 = scmp.ne.s32.totalorder %s105, %s121
    %p123 = scmp.eq.s32.totalorder %s15, 0
    %p124 = por %p122, %p123
    %p125 = scmp.le.s32.totalorder 1, %s9
    %p126 = scmp.lt.s32.totalorder %s9, 3
    %p127 = pnand %p125, %p126
    %p128 = pneg %p127
    // Predicated region
    $region9: #{depthwise_conv2d_forward.1} parent=5 // pred_check
      _
    $region10: #{depthwise_conv2d_forward.1} parent=5 // pred_check_branch
      %130 = sbr.rel (%p127) target = $region12
    $region11: #{depthwise_conv2d_forward.1} parent=5 // pred_region
      %s131 = ssub.s32 %s9, 1
      // Predicated region
      $region13: #{depthwise_conv2d_forward.1} parent=11 // pred_check
        %p132 = pneg %p68
      $region14: #{depthwise_conv2d_forward.1} parent=11 // pred_check_branch
        %134 = sbr.rel (%p132) target = $region16
      $region15: #{depthwise_conv2d_forward.1} parent=11 // pred_region
        _
      $region16: #{depthwise_conv2d_forward.1} parent=11 // pred_fallthru
        _
      // Predicated region
      $region17: #{depthwise_conv2d_forward.1} parent=11 // pred_check
        %p135 = pneg %p89
      $region18: #{depthwise_conv2d_forward.1} parent=11 // pred_check_branch
        %137 = sbr.rel (%p135) target = $region20
      $region19: #{depthwise_conv2d_forward.1} parent=11 // pred_region
        _
      $region20: #{depthwise_conv2d_forward.1} parent=11 // pred_fallthru
        _
    $region12: #{depthwise_conv2d_forward.1} parent=5 // pred_fallthru
      _
    %p138 = scmp.lt.s32.totalorder %s9, 2
    // Predicated region
    $region21: #{depthwise_conv2d_forward.1} parent=5 // pred_check
      %p139 = pneg %p138
    $region22: #{depthwise_conv2d_forward.1} parent=5 // pred_check_branch
      %141 = sbr.rel (%p139) target = $region24
    $region23: #{depthwise_conv2d_forward.1} parent=5 // pred_region
      // Predicated region
      $region25: #{depthwise_conv2d_forward.1} parent=23 // pred_check
        %p142 = pneg %p41
      $region26: #{depthwise_conv2d_forward.1} parent=23 // pred_check_branch
        %144 = sbr.rel (%p142) target = $region28
      $region27: #{depthwise_conv2d_forward.1} parent=23 // pred_region
        %p145 = scmp.lt.s32.totalorder %s16, 1
        %s146 = scalar_select %p145, %s16, 1
        %s147 = smul.addr %s146, 54
        %s148 = smul.addr %s147, 4
        %s149 = scalar_lea.vmem %s0, %s148
      $region28: #{depthwise_conv2d_forward.1} parent=23 // pred_fallthru
        _
    $region24: #{depthwise_conv2d_forward.1} parent=5 // pred_fallthru
      _
    %p150 = scmp.le.s32.totalorder 1, %s9
    %p151 = scmp.lt.s32.totalorder %s9, 3
    %p152 = pnand %p150, %p151
    %p153 = pneg %p152
    // Predicated region
    $region29: #{depthwise_conv2d_forward.1} parent=5 // pred_check
      _
    $region30: #{depthwise_conv2d_forward.1} parent=5 // pred_check_branch
      %155 = sbr.rel (%p152) target = $region32
    $region31: #{depthwise_conv2d_forward.1} parent=5 // pred_region
      %s156 = ssub.s32 %s9, 1
      %p157 = scmp.lt.s32.totalorder %s18, 1
      %s158 = scalar_select %p157, %s18, 1
      %s159 = smul.addr %s158, 54
      %s160 = smul.addr %s159, 4
      %s161 = scalar_lea.vmem %s0, %s160
      %p162 = pneg %p47
      %p163 = pneg %p44
      %p164 = pneg %p68
      %p165 = pneg %p65
      %p166 = pneg %p89
      %p167 = pneg %p86
      %p168 = pneg %p117
      %p169 = pneg %p114
      %s170 = smul.u32 32, %s19
      %p171 = scmp.lt.s32.totalorder %s18, 1
      %s172 = scalar_select %p171, %s18, 1
      %p173 = scmp.lt.s32.totalorder %s170, 31
      %s174 = scalar_select %p173, %s170, 31
      %s175 = smul.addr %s172, 32
      %s176 = sadd.s32 %s174, %s175
      %s177 = smul.addr %s176, 4
      %s178 = scalar_lea.vmem %s3, %s177
      %p179 = scmp.lt.s32.totalorder %s18, 1
      %s180 = scalar_select %p179, %s18, 1
      %s181 = smul.addr %s180, 54
      %s182 = smul.addr %s181, 4
      %s183 = scalar_lea.vmem %s0, %s182
      %s184 = smul.u32 32, %s19
      %p185 = scmp.lt.s32.totalorder %s18, 1
      %s186 = scalar_select %p185, %s18, 1
      %p187 = scmp.lt.s32.totalorder %s184, 31
      %s188 = scalar_select %p187, %s184, 31
      %s189 = smul.addr %s186, 32
      %s190 = sadd.s32 %s188, %s189
      %s191 = smul.addr %s190, 4
      %s192 = scalar_lea.vmem %s3, %s191
      %s193 = smul.u32 32, %s19
      %s195 = smul.u32 %s19, 16
      %s196 = smul.u32 %s195, 3
      %s197 = smul.addr %s196, 4
      %s198 = scalar_lea.vmem %s183, %s197
      %v199 = vld [vmem:[%s198] sm:$0xf]
      %v200 = vld [vmem:[%s198 + $0x4] sm:$0xf]
      %v201 = vld [vmem:[%s198 + $0xc] sm:$0xf]
      %v202 = vld [vmem:[%s198 + $0x10] sm:$0xf]
      %v203 = vld [vmem:[%s198 + $0x18] sm:$0xf]
      %v204 = vld [vmem:[%s198 + $0x1c] sm:$0xf]
      %v205 = vld [vmem:[%s198 + $0x24] sm:$0xf]
      %v206 = vld [vmem:[%s198 + $0x28] sm:$0xf]
      %v207 = vld [vmem:[%s198 + $0x30] sm:$0xf]
      %v208 = vld [vmem:[%s198 + $0x34] sm:$0xf]
      %v209 = vld [vmem:[%s198 + $0x3c] sm:$0xf]
      %v210 = vld [vmem:[%s198 + $0x40] sm:$0xf]
      %v211 = vld [vmem:[%s198 + $0x48] sm:$0xf]
      %v212 = vld [vmem:[%s198 + $0x4c] sm:$0xf]
      %v213 = vld [vmem:[%s198 + $0x54] sm:$0xf]
      %v214 = vld [vmem:[%s198 + $0x58] sm:$0xf]
      %v215 = vld [vmem:[%s198 + $0x60] sm:$0xf]
      %v216 = vld [vmem:[%s198 + $0x64] sm:$0xf]
      %v217 = vld [vmem:[%s198 + $0x6c] sm:$0xf]
      %v218 = vld [vmem:[%s198 + $0x70] sm:$0xf]
      %v219 = vld [vmem:[%s198 + $0x78] sm:$0xf]
      %v220 = vld [vmem:[%s198 + $0x7c] sm:$0xf]
      %v221 = vld [vmem:[%s198 + $0x84] sm:$0xf]
      %v222 = vld [vmem:[%s198 + $0x88] sm:$0xf]
      %v223 = vld [vmem:[%s198 + $0x90] sm:$0xf]
      %v224 = vld [vmem:[%s198 + $0x94] sm:$0xf]
      %v225 = vld [vmem:[%s198 + $0x9c] sm:$0xf]
      %v226 = vld [vmem:[%s198 + $0xa0] sm:$0xf]
      %v227 = vld [vmem:[%s198 + $0xa8] sm:$0xf]
      %v228 = vld [vmem:[%s198 + $0xac] sm:$0xf]
      %v229 = vld [vmem:[%s198 + $0xb4] sm:$0xf]
      %v230 = vld [vmem:[%s198 + $0xb8] sm:$0xf]
      %v231 = vld [vmem:[%s198 + $0x8] sm:$0x1]
      %v232 = vld [vmem:[%s198 + $0x14] sm:$0x1]
      %v233 = vld [vmem:[%s198 + $0x20] sm:$0x1]
      %v234 = vld [vmem:[%s198 + $0x2c] sm:$0x1]
      %v235 = vld [vmem:[%s198 + $0x38] sm:$0x1]
      %v236 = vld [vmem:[%s198 + $0x44] sm:$0x1]
      %v237 = vld [vmem:[%s198 + $0x50] sm:$0x1]
      %v238 = vld [vmem:[%s198 + $0x5c] sm:$0x1]
      %v239 = vld [vmem:[%s198 + $0x68] sm:$0x1]
      %v240 = vld [vmem:[%s198 + $0x74] sm:$0x1]
      %v241 = vld [vmem:[%s198 + $0x80] sm:$0x1]
      %v242 = vld [vmem:[%s198 + $0x8c] sm:$0x1]
      %v243 = vld [vmem:[%s198 + $0x98] sm:$0x1]
      %v244 = vld [vmem:[%s198 + $0xa4] sm:$0x1]
      %v245 = vld [vmem:[%s198 + $0xb0] sm:$0x1]
      %v246 = vld [vmem:[%s198 + $0xbc] sm:$0x1]
      %v247 = vld [vmem:[%s198] sm:$0xe]
      %v248 = vld [vmem:[%s198 + $0xc] sm:$0xe]
      %v249 = vld [vmem:[%s198 + $0x18] sm:$0xe]
      %v250 = vld [vmem:[%s198 + $0x24] sm:$0xe]
      %v251 = vld [vmem:[%s198 + $0x30] sm:$0xe]
      %v252 = vld [vmem:[%s198 + $0x3c] sm:$0xe]
      %v253 = vld [vmem:[%s198 + $0x48] sm:$0xe]
      %v254 = vld [vmem:[%s198 + $0x54] sm:$0xe]
      %v255 = vld [vmem:[%s198 + $0x60] sm:$0xe]
      %v256 = vld [vmem:[%s198 + $0x6c] sm:$0xe]
      %v257 = vld [vmem:[%s198 + $0x78] sm:$0xe]
      %v258 = vld [vmem:[%s198 + $0x84] sm:$0xe]
      %v259 = vld [vmem:[%s198 + $0x90] sm:$0xe]
      %v260 = vld [vmem:[%s198 + $0x9c] sm:$0xe]
      %v261 = vld [vmem:[%s198 + $0xa8] sm:$0xe]
      %v262 = vld [vmem:[%s198 + $0xb4] sm:$0xe]
      %s263 = sadd.s32 %s195, 1
      %s264 = smul.u32 %s263, 3
      %s265 = smul.addr %s264, 4
      %s266 = scalar_lea.vmem %s183, %s265
      %v267 = vld [vmem:[%s266] sm:$0xf]
      %v268 = vld [vmem:[%s266 + $0x4] sm:$0xf]
      %v269 = vld [vmem:[%s266 + $0xc] sm:$0xf]
      %v270 = vld [vmem:[%s266 + $0x10] sm:$0xf]
      %v271 = vld [vmem:[%s266 + $0x18] sm:$0xf]
      %v272 = vld [vmem:[%s266 + $0x1c] sm:$0xf]
      %v273 = vld [vmem:[%s266 + $0x24] sm:$0xf]
      %v274 = vld [vmem:[%s266 + $0x28] sm:$0xf]
      %v275 = vld [vmem:[%s266 + $0x30] sm:$0xf]
      %v276 = vld [vmem:[%s266 + $0x34] sm:$0xf]
      %v277 = vld [vmem:[%s266 + $0x3c] sm:$0xf]
      %v278 = vld [vmem:[%s266 + $0x40] sm:$0xf]
      %v279 = vld [vmem:[%s266 + $0x48] sm:$0xf]
      %v280 = vld [vmem:[%s266 + $0x4c] sm:$0xf]
      %v281 = vld [vmem:[%s266 + $0x54] sm:$0xf]
      %v282 = vld [vmem:[%s266 + $0x58] sm:$0xf]
      %v283 = vld [vmem:[%s266 + $0x60] sm:$0xf]
      %v284 = vld [vmem:[%s266 + $0x64] sm:$0xf]
      %v285 = vld [vmem:[%s266 + $0x6c] sm:$0xf]
      %v286 = vld [vmem:[%s266 + $0x70] sm:$0xf]
      %v287 = vld [vmem:[%s266 + $0x78] sm:$0xf]
      %v288 = vld [vmem:[%s266 + $0x7c] sm:$0xf]
      %v289 = vld [vmem:[%s266 + $0x84] sm:$0xf]
      %v290 = vld [vmem:[%s266 + $0x88] sm:$0xf]
      %v291 = vld [vmem:[%s266 + $0x90] sm:$0xf]
      %v292 = vld [vmem:[%s266 + $0x94] sm:$0xf]
      %v293 = vld [vmem:[%s266 + $0x9c] sm:$0xf]
      %v294 = vld [vmem:[%s266 + $0xa0] sm:$0xf]
      %v295 = vld [vmem:[%s266 + $0xa8] sm:$0xf]
      %v296 = vld [vmem:[%s266 + $0xac] sm:$0xf]
      %v297 = vld [vmem:[%s266 + $0xb4] sm:$0xf]
      %v298 = vld [vmem:[%s266 + $0xb8] sm:$0xf]
      %v299 = vld [vmem:[%s266 + $0x8] sm:$0x1]
      %v300 = vld [vmem:[%s266 + $0x14] sm:$0x1]
      %v301 = vld [vmem:[%s266 + $0x20] sm:$0x1]
      %v302 = vld [vmem:[%s266 + $0x2c] sm:$0x1]
      %v303 = vld [vmem:[%s266 + $0x38] sm:$0x1]
      %v304 = vld [vmem:[%s266 + $0x44] sm:$0x1]
      %v305 = vld [vmem:[%s266 + $0x50] sm:$0x1]
      %v306 = vld [vmem:[%s266 + $0x5c] sm:$0x1]
      %v307 = vld [vmem:[%s266 + $0x68] sm:$0x1]
      %v308 = vld [vmem:[%s266 + $0x74] sm:$0x1]
      %v309 = vld [vmem:[%s266 + $0x80] sm:$0x1]
      %v310 = vld [vmem:[%s266 + $0x8c] sm:$0x1]
      %v311 = vld [vmem:[%s266 + $0x98] sm:$0x1]
      %v312 = vld [vmem:[%s266 + $0xa4] sm:$0x1]
      %v313 = vld [vmem:[%s266 + $0xb0] sm:$0x1]
      %v314 = vld [vmem:[%s266 + $0xbc] sm:$0x1]
      %v315 = vld [vmem:[%s266] sm:$0xe]
      %v316 = vld [vmem:[%s266 + $0xc] sm:$0xe]
      %v317 = vld [vmem:[%s266 + $0x18] sm:$0xe]
      %v318 = vld [vmem:[%s266 + $0x24] sm:$0xe]
      %v319 = vld [vmem:[%s266 + $0x30] sm:$0xe]
      %v320 = vld [vmem:[%s266 + $0x3c] sm:$0xe]
      %v321 = vld [vmem:[%s266 + $0x48] sm:$0xe]
      %v322 = vld [vmem:[%s266 + $0x54] sm:$0xe]
      %v323 = vld [vmem:[%s266 + $0x60] sm:$0xe]
      %v324 = vld [vmem:[%s266 + $0x6c] sm:$0xe]
      %v325 = vld [vmem:[%s266 + $0x78] sm:$0xe]
      %v326 = vld [vmem:[%s266 + $0x84] sm:$0xe]
      %v327 = vld [vmem:[%s266 + $0x90] sm:$0xe]
      %v328 = vld [vmem:[%s266 + $0x9c] sm:$0xe]
      %v329 = vld [vmem:[%s266 + $0xa8] sm:$0xe]
      %v330 = vld [vmem:[%s266 + $0xb4] sm:$0xe]
      %s331 = sadd.s32 %s195, 2
      %s332 = smul.u32 %s331, 3
      %s333 = smul.addr %s332, 4
      %s334 = scalar_lea.vmem %s183, %s333
      %v335 = vld [vmem:[%s334] sm:$0xf]
      %v336 = vld [vmem:[%s334 + $0x4] sm:$0xf]
      %v337 = vld [vmem:[%s334 + $0xc] sm:$0xf]
      %v338 = vld [vmem:[%s334 + $0x10] sm:$0xf]
      %v339 = vld [vmem:[%s334 + $0x18] sm:$0xf]
      %v340 = vld [vmem:[%s334 + $0x1c] sm:$0xf]
      %v341 = vld [vmem:[%s334 + $0x24] sm:$0xf]
      %v342 = vld [vmem:[%s334 + $0x28] sm:$0xf]
      %v343 = vld [vmem:[%s334 + $0x30] sm:$0xf]
      %v344 = vld [vmem:[%s334 + $0x34] sm:$0xf]
      %v345 = vld [vmem:[%s334 + $0x3c] sm:$0xf]
      %v346 = vld [vmem:[%s334 + $0x40] sm:$0xf]
      %v347 = vld [vmem:[%s334 + $0x48] sm:$0xf]
      %v348 = vld [vmem:[%s334 + $0x4c] sm:$0xf]
      %v349 = vld [vmem:[%s334 + $0x54] sm:$0xf]
      %v350 = vld [vmem:[%s334 + $0x58] sm:$0xf]
      %v351 = vld [vmem:[%s334 + $0x60] sm:$0xf]
      %v352 = vld [vmem:[%s334 + $0x64] sm:$0xf]
      %v353 = vld [vmem:[%s334 + $0x6c] sm:$0xf]
      %v354 = vld [vmem:[%s334 + $0x70] sm:$0xf]
      %v355 = vld [vmem:[%s334 + $0x78] sm:$0xf]
      %v356 = vld [vmem:[%s334 + $0x7c] sm:$0xf]
      %v357 = vld [vmem:[%s334 + $0x84] sm:$0xf]
      %v358 = vld [vmem:[%s334 + $0x88] sm:$0xf]
      %v359 = vld [vmem:[%s334 + $0x90] sm:$0xf]
      %v360 = vld [vmem:[%s334 + $0x94] sm:$0xf]
      %v361 = vld [vmem:[%s334 + $0x9c] sm:$0xf]
      %v362 = vld [vmem:[%s334 + $0xa0] sm:$0xf]
      %v363 = vld [vmem:[%s334 + $0xa8] sm:$0xf]
      %v364 = vld [vmem:[%s334 + $0xac] sm:$0xf]
      %v365 = vld [vmem:[%s334 + $0xb4] sm:$0xf]
      %v366 = vld [vmem:[%s334 + $0xb8] sm:$0xf]
      %v367 = vld [vmem:[%s334 + $0x8] sm:$0x1]
      %v368 = vld [vmem:[%s334 + $0x14] sm:$0x1]
      %v369 = vld [vmem:[%s334 + $0x20] sm:$0x1]
      %v370 = vld [vmem:[%s334 + $0x2c] sm:$0x1]
      %v371 = vld [vmem:[%s334 + $0x38] sm:$0x1]
      %v372 = vld [vmem:[%s334 + $0x44] sm:$0x1]
      %v373 = vld [vmem:[%s334 + $0x50] sm:$0x1]
      %v374 = vld [vmem:[%s334 + $0x5c] sm:$0x1]
      %v375 = vld [vmem:[%s334 + $0x68] sm:$0x1]
      %v376 = vld [vmem:[%s334 + $0x74] sm:$0x1]
      %v377 = vld [vmem:[%s334 + $0x80] sm:$0x1]
      %v378 = vld [vmem:[%s334 + $0x8c] sm:$0x1]
      %v379 = vld [vmem:[%s334 + $0x98] sm:$0x1]
      %v380 = vld [vmem:[%s334 + $0xa4] sm:$0x1]
      %v381 = vld [vmem:[%s334 + $0xb0] sm:$0x1]
      %v382 = vld [vmem:[%s334 + $0xbc] sm:$0x1]
      %v383 = vld [vmem:[%s334] sm:$0xe]
      %v384 = vld [vmem:[%s334 + $0xc] sm:$0xe]
      %v385 = vld [vmem:[%s334 + $0x18] sm:$0xe]
      %v386 = vld [vmem:[%s334 + $0x24] sm:$0xe]
      %v387 = vld [vmem:[%s334 + $0x30] sm:$0xe]
      %v388 = vld [vmem:[%s334 + $0x3c] sm:$0xe]
      %v389 = vld [vmem:[%s334 + $0x48] sm:$0xe]
      %v390 = vld [vmem:[%s334 + $0x54] sm:$0xe]
      %v391 = vld [vmem:[%s334 + $0x60] sm:$0xe]
      %v392 = vld [vmem:[%s334 + $0x6c] sm:$0xe]
      %v393 = vld [vmem:[%s334 + $0x78] sm:$0xe]
      %v394 = vld [vmem:[%s334 + $0x84] sm:$0xe]
      %v395 = vld [vmem:[%s334 + $0x90] sm:$0xe]
      %v396 = vld [vmem:[%s334 + $0x9c] sm:$0xe]
      %v397 = vld [vmem:[%s334 + $0xa8] sm:$0xe]
      %v398 = vld [vmem:[%s334 + $0xb4] sm:$0xe]
      %v431 = vunpack.c.l.b16 %v199
      %v432 = vunpack.c.l.b16 %v200
      %v433 = vunpack.c.l.b16 %v201
      %v434 = vunpack.c.l.b16 %v202
      %v435 = vunpack.c.l.b16 %v203
      %v436 = vunpack.c.l.b16 %v204
      %v437 = vunpack.c.l.b16 %v205
      %v438 = vunpack.c.l.b16 %v206
      %v439 = vunpack.c.l.b16 %v207
      %v440 = vunpack.c.l.b16 %v208
      %v441 = vunpack.c.l.b16 %v209
      %v442 = vunpack.c.l.b16 %v210
      %v443 = vunpack.c.l.b16 %v211
      %v444 = vunpack.c.l.b16 %v212
      %v445 = vunpack.c.l.b16 %v213
      %v446 = vunpack.c.l.b16 %v214
      %v447 = vunpack.c.l.b16 %v215
      %v448 = vunpack.c.l.b16 %v216
      %v449 = vunpack.c.l.b16 %v217
      %v450 = vunpack.c.l.b16 %v218
      %v451 = vunpack.c.l.b16 %v219
      %v452 = vunpack.c.l.b16 %v220
      %v453 = vunpack.c.l.b16 %v221
      %v454 = vunpack.c.l.b16 %v222
      %v455 = vunpack.c.l.b16 %v223
      %v456 = vunpack.c.l.b16 %v224
      %v457 = vunpack.c.l.b16 %v225
      %v458 = vunpack.c.l.b16 %v226
      %v459 = vunpack.c.l.b16 %v227
      %v460 = vunpack.c.l.b16 %v228
      %v461 = vunpack.c.l.b16 %v229
      %v462 = vunpack.c.l.b16 %v230
      %v463 = vpack.c.b16 %v432, %v431
      %v464 = vpack.c.b16 %v434, %v433
      %v465 = vpack.c.b16 %v436, %v435
      %v466 = vpack.c.b16 %v438, %v437
      %v467 = vpack.c.b16 %v440, %v439
      %v468 = vpack.c.b16 %v442, %v441
      %v469 = vpack.c.b16 %v444, %v443
      %v470 = vpack.c.b16 %v446, %v445
      %v471 = vpack.c.b16 %v448, %v447
      %v472 = vpack.c.b16 %v450, %v449
      %v473 = vpack.c.b16 %v452, %v451
      %v474 = vpack.c.b16 %v454, %v453
      %v475 = vpack.c.b16 %v456, %v455
      %v476 = vpack.c.b16 %v458, %v457
      %v477 = vpack.c.b16 %v460, %v459
      %v478 = vpack.c.b16 %v462, %v461
      %v495 = vunpack.c.l.b16 %v231
      %v496 = vunpack.c.l.b16 %v232
      %v497 = vunpack.c.l.b16 %v233
      %v498 = vunpack.c.l.b16 %v234
      %v499 = vunpack.c.l.b16 %v235
      %v500 = vunpack.c.l.b16 %v236
      %v501 = vunpack.c.l.b16 %v237
      %v502 = vunpack.c.l.b16 %v238
      %v503 = vunpack.c.l.b16 %v239
      %v504 = vunpack.c.l.b16 %v240
      %v505 = vunpack.c.l.b16 %v241
      %v506 = vunpack.c.l.b16 %v242
      %v507 = vunpack.c.l.b16 %v243
      %v508 = vunpack.c.l.b16 %v244
      %v509 = vunpack.c.l.b16 %v245
      %v510 = vunpack.c.l.b16 %v246
      %v511 = vpack.c.b16 %v495, %v495
      %v512 = vpack.c.b16 %v496, %v496
      %v513 = vpack.c.b16 %v497, %v497
      %v514 = vpack.c.b16 %v498, %v498
      %v515 = vpack.c.b16 %v499, %v499
      %v516 = vpack.c.b16 %v500, %v500
      %v517 = vpack.c.b16 %v501, %v501
      %v518 = vpack.c.b16 %v502, %v502
      %v519 = vpack.c.b16 %v503, %v503
      %v520 = vpack.c.b16 %v504, %v504
      %v521 = vpack.c.b16 %v505, %v505
      %v522 = vpack.c.b16 %v506, %v506
      %v523 = vpack.c.b16 %v507, %v507
      %v524 = vpack.c.b16 %v508, %v508
      %v525 = vpack.c.b16 %v509, %v509
      %v526 = vpack.c.b16 %v510, %v510
      %vm527 = vsmask.f32 7424
      %v529 = vshrl.u32 %v463, 16
      %v531 = vshll.u32 %v463, 16
      %v533 = vrot.slane %v531, 1
      %v534 = vor.u32 %v529, %v533
      %v536 = vshll.u32 %v511, 16
      %v538 = vrot.slane %v536, 1
      %v539 = vsel %vm527, %v534, %v538
      %v541 = vshrl.u32 %v464, 16
      %v543 = vshll.u32 %v464, 16
      %v545 = vrot.slane %v543, 1
      %v546 = vor.u32 %v541, %v545
      %v548 = vshll.u32 %v512, 16
      %v550 = vrot.slane %v548, 1
      %v551 = vsel %vm527, %v546, %v550
      %v553 = vshrl.u32 %v465, 16
      %v555 = vshll.u32 %v465, 16
      %v557 = vrot.slane %v555, 1
      %v558 = vor.u32 %v553, %v557
      %v560 = vshll.u32 %v513, 16
      %v562 = vrot.slane %v560, 1
      %v563 = vsel %vm527, %v558, %v562
      %v565 = vshrl.u32 %v466, 16
      %v567 = vshll.u32 %v466, 16
      %v569 = vrot.slane %v567, 1
      %v570 = vor.u32 %v565, %v569
      %v572 = vshll.u32 %v514, 16
      %v574 = vrot.slane %v572, 1
      %v575 = vsel %vm527, %v570, %v574
      %v577 = vshrl.u32 %v467, 16
      %v579 = vshll.u32 %v467, 16
      %v581 = vrot.slane %v579, 1
      %v582 = vor.u32 %v577, %v581
      %v584 = vshll.u32 %v515, 16
      %v586 = vrot.slane %v584, 1
      %v587 = vsel %vm527, %v582, %v586
      %v589 = vshrl.u32 %v468, 16
      %v591 = vshll.u32 %v468, 16
      %v593 = vrot.slane %v591, 1
      %v594 = vor.u32 %v589, %v593
      %v596 = vshll.u32 %v516, 16
      %v598 = vrot.slane %v596, 1
      %v599 = vsel %vm527, %v594, %v598
      %v601 = vshrl.u32 %v469, 16
      %v603 = vshll.u32 %v469, 16
      %v605 = vrot.slane %v603, 1
      %v606 = vor.u32 %v601, %v605
      %v608 = vshll.u32 %v517, 16
      %v610 = vrot.slane %v608, 1
      %v611 = vsel %vm527, %v606, %v610
      %v613 = vshrl.u32 %v470, 16
      %v615 = vshll.u32 %v470, 16
      %v617 = vrot.slane %v615, 1
      %v618 = vor.u32 %v613, %v617
      %v620 = vshll.u32 %v518, 16
      %v622 = vrot.slane %v620, 1
      %v623 = vsel %vm527, %v618, %v622
      %v625 = vshrl.u32 %v471, 16
      %v627 = vshll.u32 %v471, 16
      %v629 = vrot.slane %v627, 1
      %v630 = vor.u32 %v625, %v629
      %v632 = vshll.u32 %v519, 16
      %v634 = vrot.slane %v632, 1
      %v635 = vsel %vm527, %v630, %v634
      %v637 = vshrl.u32 %v472, 16
      %v639 = vshll.u32 %v472, 16
      %v641 = vrot.slane %v639, 1
      %v642 = vor.u32 %v637, %v641
      %v644 = vshll.u32 %v520, 16
      %v646 = vrot.slane %v644, 1
      %v647 = vsel %vm527, %v642, %v646
      %v649 = vshrl.u32 %v473, 16
      %v651 = vshll.u32 %v473, 16
      %v653 = vrot.slane %v651, 1
      %v654 = vor.u32 %v649, %v653
      %v656 = vshll.u32 %v521, 16
      %v658 = vrot.slane %v656, 1
      %v659 = vsel %vm527, %v654, %v658
      %v661 = vshrl.u32 %v474, 16
      %v663 = vshll.u32 %v474, 16
      %v665 = vrot.slane %v663, 1
      %v666 = vor.u32 %v661, %v665
      %v668 = vshll.u32 %v522, 16
      %v670 = vrot.slane %v668, 1
      %v671 = vsel %vm527, %v666, %v670
      %v673 = vshrl.u32 %v475, 16
      %v675 = vshll.u32 %v475, 16
      %v677 = vrot.slane %v675, 1
      %v678 = vor.u32 %v673, %v677
      %v680 = vshll.u32 %v523, 16
      %v682 = vrot.slane %v680, 1
      %v683 = vsel %vm527, %v678, %v682
      %v685 = vshrl.u32 %v476, 16
      %v687 = vshll.u32 %v476, 16
      %v689 = vrot.slane %v687, 1
      %v690 = vor.u32 %v685, %v689
      %v692 = vshll.u32 %v524, 16
      %v694 = vrot.slane %v692, 1
      %v695 = vsel %vm527, %v690, %v694
      %v697 = vshrl.u32 %v477, 16
      %v699 = vshll.u32 %v477, 16
      %v701 = vrot.slane %v699, 1
      %v702 = vor.u32 %v697, %v701
      %v704 = vshll.u32 %v525, 16
      %v706 = vrot.slane %v704, 1
      %v707 = vsel %vm527, %v702, %v706
      %v709 = vshrl.u32 %v478, 16
      %v711 = vshll.u32 %v478, 16
      %v713 = vrot.slane %v711, 1
      %v714 = vor.u32 %v709, %v713
      %v716 = vshll.u32 %v526, 16
      %v718 = vrot.slane %v716, 1
      %v719 = vsel %vm527, %v714, %v718
      %720 = vrot.lane.b32.xlu0 %v539, 32
      %v721 = vpop.permute.xlu0 %720
      %722 = vrot.lane.b32.xlu0 %v551, 32
      %v723 = vpop.permute.xlu0 %722
      %724 = vrot.lane.b32.xlu0 %v563, 32
      %v725 = vpop.permute.xlu0 %724
      %726 = vrot.lane.b32.xlu0 %v575, 32
      %v727 = vpop.permute.xlu0 %726
      %728 = vrot.lane.b32.xlu0 %v587, 32
      %v729 = vpop.permute.xlu0 %728
      %730 = vrot.lane.b32.xlu0 %v599, 32
      %v731 = vpop.permute.xlu0 %730
      %732 = vrot.lane.b32.xlu0 %v611, 32
      %v733 = vpop.permute.xlu0 %732
      %734 = vrot.lane.b32.xlu0 %v623, 32
      %v735 = vpop.permute.xlu0 %734
      %736 = vrot.lane.b32.xlu0 %v635, 32
      %v737 = vpop.permute.xlu0 %736
      %738 = vrot.lane.b32.xlu0 %v647, 32
      %v739 = vpop.permute.xlu0 %738
      %740 = vrot.lane.b32.xlu0 %v659, 32
      %v741 = vpop.permute.xlu0 %740
      %742 = vrot.lane.b32.xlu0 %v671, 32
      %v743 = vpop.permute.xlu0 %742
      %744 = vrot.lane.b32.xlu0 %v683, 32
      %v745 = vpop.permute.xlu0 %744
      %746 = vrot.lane.b32.xlu0 %v695, 32
      %v747 = vpop.permute.xlu0 %746
      %748 = vrot.lane.b32.xlu0 %v707, 32
      %v749 = vpop.permute.xlu0 %748
      %750 = vrot.lane.b32.xlu0 %v719, 32
      %v751 = vpop.permute.xlu0 %750
      %v768 = vunpack.c.l.b16 %v247
      %v769 = vunpack.c.l.b16 %v248
      %v770 = vunpack.c.l.b16 %v249
      %v771 = vunpack.c.l.b16 %v250
      %v772 = vunpack.c.l.b16 %v251
      %v773 = vunpack.c.l.b16 %v252
      %v774 = vunpack.c.l.b16 %v253
      %v775 = vunpack.c.l.b16 %v254
      %v776 = vunpack.c.l.b16 %v255
      %v777 = vunpack.c.l.b16 %v256
      %v778 = vunpack.c.l.b16 %v257
      %v779 = vunpack.c.l.b16 %v258
      %v780 = vunpack.c.l.b16 %v259
      %v781 = vunpack.c.l.b16 %v260
      %v782 = vunpack.c.l.b16 %v261
      %v783 = vunpack.c.l.b16 %v262
      %v784 = vpack.c.b16 %v432, %v768
      %v785 = vpack.c.b16 %v434, %v769
      %v786 = vpack.c.b16 %v436, %v770
      %v787 = vpack.c.b16 %v438, %v771
      %v788 = vpack.c.b16 %v440, %v772
      %v789 = vpack.c.b16 %v442, %v773
      %v790 = vpack.c.b16 %v444, %v774
      %v791 = vpack.c.b16 %v446, %v775
      %v792 = vpack.c.b16 %v448, %v776
      %v793 = vpack.c.b16 %v450, %v777
      %v794 = vpack.c.b16 %v452, %v778
      %v795 = vpack.c.b16 %v454, %v779
      %v796 = vpack.c.b16 %v456, %v780
      %v797 = vpack.c.b16 %v458, %v781
      %v798 = vpack.c.b16 %v460, %v782
      %v799 = vpack.c.b16 %v462, %v783
      %vm800 = vcmask 1046528
      %v801 = vrot.slane %v784, 1
      %v802 = vrot.slane %v511, 1
      %v803 = vsel %vm800, %v801, %v802
      %v804 = vrot.slane %v785, 1
      %v805 = vrot.slane %v512, 1
      %v806 = vsel %vm800, %v804, %v805
      %v807 = vrot.slane %v786, 1
      %v808 = vrot.slane %v513, 1
      %v809 = vsel %vm800, %v807, %v808
      %v810 = vrot.slane %v787, 1
      %v811 = vrot.slane %v514, 1
      %v812 = vsel %vm800, %v810, %v811
      %v813 = vrot.slane %v788, 1
      %v814 = vrot.slane %v515, 1
      %v815 = vsel %vm800, %v813, %v814
      %v816 = vrot.slane %v789, 1
      %v817 = vrot.slane %v516, 1
      %v818 = vsel %vm800, %v816, %v817
      %v819 = vrot.slane %v790, 1
      %v820 = vrot.slane %v517, 1
      %v821 = vsel %vm800, %v819, %v820
      %v822 = vrot.slane %v791, 1
      %v823 = vrot.slane %v518, 1
      %v824 = vsel %vm800, %v822, %v823
      %v825 = vrot.slane %v792, 1
      %v826 = vrot.slane %v519, 1
      %v827 = vsel %vm800, %v825, %v826
      %v828 = vrot.slane %v793, 1
      %v829 = vrot.slane %v520, 1
      %v830 = vsel %vm800, %v828, %v829
      %v831 = vrot.slane %v794, 1
      %v832 = vrot.slane %v521, 1
      %v833 = vsel %vm800, %v831, %v832
      %v834 = vrot.slane %v795, 1
      %v835 = vrot.slane %v522, 1
      %v836 = vsel %vm800, %v834, %v835
      %v837 = vrot.slane %v796, 1
      %v838 = vrot.slane %v523, 1
      %v839 = vsel %vm800, %v837, %v838
      %v840 = vrot.slane %v797, 1
      %v841 = vrot.slane %v524, 1
      %v842 = vsel %vm800, %v840, %v841
      %v843 = vrot.slane %v798, 1
      %v844 = vrot.slane %v525, 1
      %v845 = vsel %vm800, %v843, %v844
      %v846 = vrot.slane %v799, 1
      %v847 = vrot.slane %v526, 1
      %v848 = vsel %vm800, %v846, %v847
      %849 = vrot.lane.b32.xlu0 %v803, 64
      %v850 = vpop.permute.xlu0 %849
      %851 = vrot.lane.b32.xlu0 %v806, 64
      %v852 = vpop.permute.xlu0 %851
      %853 = vrot.lane.b32.xlu0 %v809, 64
      %v854 = vpop.permute.xlu0 %853
      %855 = vrot.lane.b32.xlu0 %v812, 64
      %v856 = vpop.permute.xlu0 %855
      %857 = vrot.lane.b32.xlu0 %v815, 64
      %v858 = vpop.permute.xlu0 %857
      %859 = vrot.lane.b32.xlu0 %v818, 64
      %v860 = vpop.permute.xlu0 %859
      %861 = vrot.lane.b32.xlu0 %v821, 64
      %v862 = vpop.permute.xlu0 %861
      %863 = vrot.lane.b32.xlu0 %v824, 64
      %v864 = vpop.permute.xlu0 %863
      %865 = vrot.lane.b32.xlu0 %v827, 64
      %v866 = vpop.permute.xlu0 %865
      %867 = vrot.lane.b32.xlu0 %v830, 64
      %v868 = vpop.permute.xlu0 %867
      %869 = vrot.lane.b32.xlu0 %v833, 64
      %v870 = vpop.permute.xlu0 %869
      %871 = vrot.lane.b32.xlu0 %v836, 64
      %v872 = vpop.permute.xlu0 %871
      %873 = vrot.lane.b32.xlu0 %v839, 64
      %v874 = vpop.permute.xlu0 %873
      %875 = vrot.lane.b32.xlu0 %v842, 64
      %v876 = vpop.permute.xlu0 %875
      %877 = vrot.lane.b32.xlu0 %v845, 64
      %v878 = vpop.permute.xlu0 %877
      %879 = vrot.lane.b32.xlu0 %v848, 64
      %v880 = vpop.permute.xlu0 %879
      %v913 = vunpack.c.l.b16 %v267
      %v914 = vunpack.c.l.b16 %v268
      %v915 = vunpack.c.l.b16 %v269
      %v916 = vunpack.c.l.b16 %v270
      %v917 = vunpack.c.l.b16 %v271
      %v918 = vunpack.c.l.b16 %v272
      %v919 = vunpack.c.l.b16 %v273
      %v920 = vunpack.c.l.b16 %v274
      %v921 = vunpack.c.l.b16 %v275
      %v922 = vunpack.c.l.b16 %v276
      %v923 = vunpack.c.l.b16 %v277
      %v924 = vunpack.c.l.b16 %v278
      %v925 = vunpack.c.l.b16 %v279
      %v926 = vunpack.c.l.b16 %v280
      %v927 = vunpack.c.l.b16 %v281
      %v928 = vunpack.c.l.b16 %v282
      %v929 = vunpack.c.l.b16 %v283
      %v930 = vunpack.c.l.b16 %v284
      %v931 = vunpack.c.l.b16 %v285
      %v932 = vunpack.c.l.b16 %v286
      %v933 = vunpack.c.l.b16 %v287
      %v934 = vunpack.c.l.b16 %v288
      %v935 = vunpack.c.l.b16 %v289
      %v936 = vunpack.c.l.b16 %v290
      %v937 = vunpack.c.l.b16 %v291
      %v938 = vunpack.c.l.b16 %v292
      %v939 = vunpack.c.l.b16 %v293
      %v940 = vunpack.c.l.b16 %v294
      %v941 = vunpack.c.l.b16 %v295
      %v942 = vunpack.c.l.b16 %v296
      %v943 = vunpack.c.l.b16 %v297
      %v944 = vunpack.c.l.b16 %v298
      %v945 = vpack.c.b16 %v914, %v913
      %v946 = vpack.c.b16 %v916, %v915
      %v947 = vpack.c.b16 %v918, %v917
      %v948 = vpack.c.b16 %v920, %v919
      %v949 = vpack.c.b16 %v922, %v921
      %v950 = vpack.c.b16 %v924, %v923
      %v951 = vpack.c.b16 %v926, %v925
      %v952 = vpack.c.b16 %v928, %v927
      %v953 = vpack.c.b16 %v930, %v929
      %v954 = vpack.c.b16 %v932, %v931
      %v955 = vpack.c.b16 %v934, %v933
      %v956 = vpack.c.b16 %v936, %v935
      %v957 = vpack.c.b16 %v938, %v937
      %v958 = vpack.c.b16 %v940, %v939
      %v959 = vpack.c.b16 %v942, %v941
      %v960 = vpack.c.b16 %v944, %v943
      %961 = vrot.lane.b32.xlu0 %v945, 96
      %v962 = vpop.permute.xlu0 %961
      %963 = vrot.lane.b32.xlu0 %v946, 96
      %v964 = vpop.permute.xlu0 %963
      %965 = vrot.lane.b32.xlu0 %v947, 96
      %v966 = vpop.permute.xlu0 %965
      %967 = vrot.lane.b32.xlu0 %v948, 96
      %v968 = vpop.permute.xlu0 %967
      %969 = vrot.lane.b32.xlu0 %v949, 96
      %v970 = vpop.permute.xlu0 %969
      %971 = vrot.lane.b32.xlu0 %v950, 96
      %v972 = vpop.permute.xlu0 %971
      %973 = vrot.lane.b32.xlu0 %v951, 96
      %v974 = vpop.permute.xlu0 %973
      %975 = vrot.lane.b32.xlu0 %v952, 96
      %v976 = vpop.permute.xlu0 %975
      %977 = vrot.lane.b32.xlu0 %v953, 96
      %v978 = vpop.permute.xlu0 %977
      %979 = vrot.lane.b32.xlu0 %v954, 96
      %v980 = vpop.permute.xlu0 %979
      %981 = vrot.lane.b32.xlu0 %v955, 96
      %v982 = vpop.permute.xlu0 %981
      %983 = vrot.lane.b32.xlu0 %v956, 96
      %v984 = vpop.permute.xlu0 %983
      %985 = vrot.lane.b32.xlu0 %v957, 96
      %v986 = vpop.permute.xlu0 %985
      %987 = vrot.lane.b32.xlu0 %v958, 96
      %v988 = vpop.permute.xlu0 %987
      %989 = vrot.lane.b32.xlu0 %v959, 96
      %v990 = vpop.permute.xlu0 %989
      %991 = vrot.lane.b32.xlu0 %v960, 96
      %v992 = vpop.permute.xlu0 %991
      %v1009 = vunpack.c.l.b16 %v299
      %v1010 = vunpack.c.l.b16 %v300
      %v1011 = vunpack.c.l.b16 %v301
      %v1012 = vunpack.c.l.b16 %v302
      %v1013 = vunpack.c.l.b16 %v303
      %v1014 = vunpack.c.l.b16 %v304
      %v1015 = vunpack.c.l.b16 %v305
      %v1016 = vunpack.c.l.b16 %v306
      %v1017 = vunpack.c.l.b16 %v307
      %v1018 = vunpack.c.l.b16 %v308
      %v1019 = vunpack.c.l.b16 %v309
      %v1020 = vunpack.c.l.b16 %v310
      %v1021 = vunpack.c.l.b16 %v311
      %v1022 = vunpack.c.l.b16 %v312
      %v1023 = vunpack.c.l.b16 %v313
      %v1024 = vunpack.c.l.b16 %v314
      %v1025 = vpack.c.b16 %v1009, %v1009
      %v1026 = vpack.c.b16 %v1010, %v1010
      %v1027 = vpack.c.b16 %v1011, %v1011
      %v1028 = vpack.c.b16 %v1012, %v1012
      %v1029 = vpack.c.b16 %v1013, %v1013
      %v1030 = vpack.c.b16 %v1014, %v1014
      %v1031 = vpack.c.b16 %v1015, %v1015
      %v1032 = vpack.c.b16 %v1016, %v1016
      %v1033 = vpack.c.b16 %v1017, %v1017
      %v1034 = vpack.c.b16 %v1018, %v1018
      %v1035 = vpack.c.b16 %v1019, %v1019
      %v1036 = vpack.c.b16 %v1020, %v1020
      %v1037 = vpack.c.b16 %v1021, %v1021
      %v1038 = vpack.c.b16 %v1022, %v1022
      %v1039 = vpack.c.b16 %v1023, %v1023
      %v1040 = vpack.c.b16 %v1024, %v1024
      %v1042 = vshrl.u32 %v945, 16
      %v1044 = vshll.u32 %v945, 16
      %v1046 = vrot.slane %v1044, 1
      %v1047 = vor.u32 %v1042, %v1046
      %v1049 = vshll.u32 %v1025, 16
      %v1051 = vrot.slane %v1049, 1
      %v1052 = vsel %vm527, %v1047, %v1051
      %v1054 = vshrl.u32 %v946, 16
      %v1056 = vshll.u32 %v946, 16
      %v1058 = vrot.slane %v1056, 1
      %v1059 = vor.u32 %v1054, %v1058
      %v1061 = vshll.u32 %v1026, 16
      %v1063 = vrot.slane %v1061, 1
      %v1064 = vsel %vm527, %v1059, %v1063
      %v1066 = vshrl.u32 %v947, 16
      %v1068 = vshll.u32 %v947, 16
      %v1070 = vrot.slane %v1068, 1
      %v1071 = vor.u32 %v1066, %v1070
      %v1073 = vshll.u32 %v1027, 16
      %v1075 = vrot.slane %v1073, 1
      %v1076 = vsel %vm527, %v1071, %v1075
      %v1078 = vshrl.u32 %v948, 16
      %v1080 = vshll.u32 %v948, 16
      %v1082 = vrot.slane %v1080, 1
      %v1083 = vor.u32 %v1078, %v1082
      %v1085 = vshll.u32 %v1028, 16
      %v1087 = vrot.slane %v1085, 1
      %v1088 = vsel %vm527, %v1083, %v1087
      %v1090 = vshrl.u32 %v949, 16
      %v1092 = vshll.u32 %v949, 16
      %v1094 = vrot.slane %v1092, 1
      %v1095 = vor.u32 %v1090, %v1094
      %v1097 = vshll.u32 %v1029, 16
      %v1099 = vrot.slane %v1097, 1
      %v1100 = vsel %vm527, %v1095, %v1099
      %v1102 = vshrl.u32 %v950, 16
      %v1104 = vshll.u32 %v950, 16
      %v1106 = vrot.slane %v1104, 1
      %v1107 = vor.u32 %v1102, %v1106
      %v1109 = vshll.u32 %v1030, 16
      %v1111 = vrot.slane %v1109, 1
      %v1112 = vsel %vm527, %v1107, %v1111
      %v1114 = vshrl.u32 %v951, 16
      %v1116 = vshll.u32 %v951, 16
      %v1118 = vrot.slane %v1116, 1
      %v1119 = vor.u32 %v1114, %v1118
      %v1121 = vshll.u32 %v1031, 16
      %v1123 = vrot.slane %v1121, 1
      %v1124 = vsel %vm527, %v1119, %v1123
      %v1126 = vshrl.u32 %v952, 16
      %v1128 = vshll.u32 %v952, 16
      %v1130 = vrot.slane %v1128, 1
      %v1131 = vor.u32 %v1126, %v1130
      %v1133 = vshll.u32 %v1032, 16
      %v1135 = vrot.slane %v1133, 1
      %v1136 = vsel %vm527, %v1131, %v1135
      %v1138 = vshrl.u32 %v953, 16
      %v1140 = vshll.u32 %v953, 16
      %v1142 = vrot.slane %v1140, 1
      %v1143 = vor.u32 %v1138, %v1142
      %v1145 = vshll.u32 %v1033, 16
      %v1147 = vrot.slane %v1145, 1
      %v1148 = vsel %vm527, %v1143, %v1147
      %v1150 = vshrl.u32 %v954, 16
      %v1152 = vshll.u32 %v954, 16
      %v1154 = vrot.slane %v1152, 1
      %v1155 = vor.u32 %v1150, %v1154
      %v1157 = vshll.u32 %v1034, 16
      %v1159 = vrot.slane %v1157, 1
      %v1160 = vsel %vm527, %v1155, %v1159
      %v1162 = vshrl.u32 %v955, 16
      %v1164 = vshll.u32 %v955, 16
      %v1166 = vrot.slane %v1164, 1
      %v1167 = vor.u32 %v1162, %v1166
      %v1169 = vshll.u32 %v1035, 16
      %v1171 = vrot.slane %v1169, 1
      %v1172 = vsel %vm527, %v1167, %v1171
      %v1174 = vshrl.u32 %v956, 16
      %v1176 = vshll.u32 %v956, 16
      %v1178 = vrot.slane %v1176, 1
      %v1179 = vor.u32 %v1174, %v1178
      %v1181 = vshll.u32 %v1036, 16
      %v1183 = vrot.slane %v1181, 1
      %v1184 = vsel %vm527, %v1179, %v1183
      %v1186 = vshrl.u32 %v957, 16
      %v1188 = vshll.u32 %v957, 16
      %v1190 = vrot.slane %v1188, 1
      %v1191 = vor.u32 %v1186, %v1190
      %v1193 = vshll.u32 %v1037, 16
      %v1195 = vrot.slane %v1193, 1
      %v1196 = vsel %vm527, %v1191, %v1195
      %v1198 = vshrl.u32 %v958, 16
      %v1200 = vshll.u32 %v958, 16
      %v1202 = vrot.slane %v1200, 1
      %v1203 = vor.u32 %v1198, %v1202
      %v1205 = vshll.u32 %v1038, 16
      %v1207 = vrot.slane %v1205, 1
      %v1208 = vsel %vm527, %v1203, %v1207
      %v1210 = vshrl.u32 %v959, 16
      %v1212 = vshll.u32 %v959, 16
      %v1214 = vrot.slane %v1212, 1
      %v1215 = vor.u32 %v1210, %v1214
      %v1217 = vshll.u32 %v1039, 16
      %v1219 = vrot.slane %v1217, 1
      %v1220 = vsel %vm527, %v1215, %v1219
      %v1222 = vshrl.u32 %v960, 16
      %v1224 = vshll.u32 %v960, 16
      %v1226 = vrot.slane %v1224, 1
      %v1227 = vor.u32 %v1222, %v1226
      %v1229 = vshll.u32 %v1040, 16
      %v1231 = vrot.slane %v1229, 1
      %v1232 = vsel %vm527, %v1227, %v1231
      %v1249 = vunpack.c.l.b16 %v315
      %v1250 = vunpack.c.l.b16 %v316
      %v1251 = vunpack.c.l.b16 %v317
      %v1252 = vunpack.c.l.b16 %v318
      %v1253 = vunpack.c.l.b16 %v319
      %v1254 = vunpack.c.l.b16 %v320
      %v1255 = vunpack.c.l.b16 %v321
      %v1256 = vunpack.c.l.b16 %v322
      %v1257 = vunpack.c.l.b16 %v323
      %v1258 = vunpack.c.l.b16 %v324
      %v1259 = vunpack.c.l.b16 %v325
      %v1260 = vunpack.c.l.b16 %v326
      %v1261 = vunpack.c.l.b16 %v327
      %v1262 = vunpack.c.l.b16 %v328
      %v1263 = vunpack.c.l.b16 %v329
      %v1264 = vunpack.c.l.b16 %v330
      %v1265 = vpack.c.b16 %v914, %v1249
      %v1266 = vpack.c.b16 %v916, %v1250
      %v1267 = vpack.c.b16 %v918, %v1251
      %v1268 = vpack.c.b16 %v920, %v1252
      %v1269 = vpack.c.b16 %v922, %v1253
      %v1270 = vpack.c.b16 %v924, %v1254
      %v1271 = vpack.c.b16 %v926, %v1255
      %v1272 = vpack.c.b16 %v928, %v1256
      %v1273 = vpack.c.b16 %v930, %v1257
      %v1274 = vpack.c.b16 %v932, %v1258
      %v1275 = vpack.c.b16 %v934, %v1259
      %v1276 = vpack.c.b16 %v936, %v1260
      %v1277 = vpack.c.b16 %v938, %v1261
      %v1278 = vpack.c.b16 %v940, %v1262
      %v1279 = vpack.c.b16 %v942, %v1263
      %v1280 = vpack.c.b16 %v944, %v1264
      %v1281 = vrot.slane %v1265, 1
      %v1282 = vrot.slane %v1025, 1
      %v1283 = vsel %vm800, %v1281, %v1282
      %v1284 = vrot.slane %v1266, 1
      %v1285 = vrot.slane %v1026, 1
      %v1286 = vsel %vm800, %v1284, %v1285
      %v1287 = vrot.slane %v1267, 1
      %v1288 = vrot.slane %v1027, 1
      %v1289 = vsel %vm800, %v1287, %v1288
      %v1290 = vrot.slane %v1268, 1
      %v1291 = vrot.slane %v1028, 1
      %v1292 = vsel %vm800, %v1290, %v1291
      %v1293 = vrot.slane %v1269, 1
      %v1294 = vrot.slane %v1029, 1
      %v1295 = vsel %vm800, %v1293, %v1294
      %v1296 = vrot.slane %v1270, 1
      %v1297 = vrot.slane %v1030, 1
      %v1298 = vsel %vm800, %v1296, %v1297
      %v1299 = vrot.slane %v1271, 1
      %v1300 = vrot.slane %v1031, 1
      %v1301 = vsel %vm800, %v1299, %v1300
      %v1302 = vrot.slane %v1272, 1
      %v1303 = vrot.slane %v1032, 1
      %v1304 = vsel %vm800, %v1302, %v1303
      %v1305 = vrot.slane %v1273, 1
      %v1306 = vrot.slane %v1033, 1
      %v1307 = vsel %vm800, %v1305, %v1306
      %v1308 = vrot.slane %v1274, 1
      %v1309 = vrot.slane %v1034, 1
      %v1310 = vsel %vm800, %v1308, %v1309
      %v1311 = vrot.slane %v1275, 1
      %v1312 = vrot.slane %v1035, 1
      %v1313 = vsel %vm800, %v1311, %v1312
      %v1314 = vrot.slane %v1276, 1
      %v1315 = vrot.slane %v1036, 1
      %v1316 = vsel %vm800, %v1314, %v1315
      %v1317 = vrot.slane %v1277, 1
      %v1318 = vrot.slane %v1037, 1
      %v1319 = vsel %vm800, %v1317, %v1318
      %v1320 = vrot.slane %v1278, 1
      %v1321 = vrot.slane %v1038, 1
      %v1322 = vsel %vm800, %v1320, %v1321
      %v1323 = vrot.slane %v1279, 1
      %v1324 = vrot.slane %v1039, 1
      %v1325 = vsel %vm800, %v1323, %v1324
      %v1326 = vrot.slane %v1280, 1
      %v1327 = vrot.slane %v1040, 1
      %v1328 = vsel %vm800, %v1326, %v1327
      %1329 = vrot.lane.b32.xlu0 %v1283, 32
      %v1330 = vpop.permute.xlu0 %1329
      %1331 = vrot.lane.b32.xlu0 %v1286, 32
      %v1332 = vpop.permute.xlu0 %1331
      %1333 = vrot.lane.b32.xlu0 %v1289, 32
      %v1334 = vpop.permute.xlu0 %1333
      %1335 = vrot.lane.b32.xlu0 %v1292, 32
      %v1336 = vpop.permute.xlu0 %1335
      %1337 = vrot.lane.b32.xlu0 %v1295, 32
      %v1338 = vpop.permute.xlu0 %1337
      %1339 = vrot.lane.b32.xlu0 %v1298, 32
      %v1340 = vpop.permute.xlu0 %1339
      %1341 = vrot.lane.b32.xlu0 %v1301, 32
      %v1342 = vpop.permute.xlu0 %1341
      %1343 = vrot.lane.b32.xlu0 %v1304, 32
      %v1344 = vpop.permute.xlu0 %1343
      %1345 = vrot.lane.b32.xlu0 %v1307, 32
      %v1346 = vpop.permute.xlu0 %1345
      %1347 = vrot.lane.b32.xlu0 %v1310, 32
      %v1348 = vpop.permute.xlu0 %1347
      %1349 = vrot.lane.b32.xlu0 %v1313, 32
      %v1350 = vpop.permute.xlu0 %1349
      %1351 = vrot.lane.b32.xlu0 %v1316, 32
      %v1352 = vpop.permute.xlu0 %1351
      %1353 = vrot.lane.b32.xlu0 %v1319, 32
      %v1354 = vpop.permute.xlu0 %1353
      %1355 = vrot.lane.b32.xlu0 %v1322, 32
      %v1356 = vpop.permute.xlu0 %1355
      %1357 = vrot.lane.b32.xlu0 %v1325, 32
      %v1358 = vpop.permute.xlu0 %1357
      %1359 = vrot.lane.b32.xlu0 %v1328, 32
      %v1360 = vpop.permute.xlu0 %1359
      %v1393 = vunpack.c.l.b16 %v335
      %v1394 = vunpack.c.l.b16 %v336
      %v1395 = vunpack.c.l.b16 %v337
      %v1396 = vunpack.c.l.b16 %v338
      %v1397 = vunpack.c.l.b16 %v339
      %v1398 = vunpack.c.l.b16 %v340
      %v1399 = vunpack.c.l.b16 %v341
      %v1400 = vunpack.c.l.b16 %v342
      %v1401 = vunpack.c.l.b16 %v343
      %v1402 = vunpack.c.l.b16 %v344
      %v1403 = vunpack.c.l.b16 %v345
      %v1404 = vunpack.c.l.b16 %v346
      %v1405 = vunpack.c.l.b16 %v347
      %v1406 = vunpack.c.l.b16 %v348
      %v1407 = vunpack.c.l.b16 %v349
      %v1408 = vunpack.c.l.b16 %v350
      %v1409 = vunpack.c.l.b16 %v351
      %v1410 = vunpack.c.l.b16 %v352
      %v1411 = vunpack.c.l.b16 %v353
      %v1412 = vunpack.c.l.b16 %v354
      %v1413 = vunpack.c.l.b16 %v355
      %v1414 = vunpack.c.l.b16 %v356
      %v1415 = vunpack.c.l.b16 %v357
      %v1416 = vunpack.c.l.b16 %v358
      %v1417 = vunpack.c.l.b16 %v359
      %v1418 = vunpack.c.l.b16 %v360
      %v1419 = vunpack.c.l.b16 %v361
      %v1420 = vunpack.c.l.b16 %v362
      %v1421 = vunpack.c.l.b16 %v363
      %v1422 = vunpack.c.l.b16 %v364
      %v1423 = vunpack.c.l.b16 %v365
      %v1424 = vunpack.c.l.b16 %v366
      %v1425 = vpack.c.b16 %v1394, %v1393
      %v1426 = vpack.c.b16 %v1396, %v1395
      %v1427 = vpack.c.b16 %v1398, %v1397
      %v1428 = vpack.c.b16 %v1400, %v1399
      %v1429 = vpack.c.b16 %v1402, %v1401
      %v1430 = vpack.c.b16 %v1404, %v1403
      %v1431 = vpack.c.b16 %v1406, %v1405
      %v1432 = vpack.c.b16 %v1408, %v1407
      %v1433 = vpack.c.b16 %v1410, %v1409
      %v1434 = vpack.c.b16 %v1412, %v1411
      %v1435 = vpack.c.b16 %v1414, %v1413
      %v1436 = vpack.c.b16 %v1416, %v1415
      %v1437 = vpack.c.b16 %v1418, %v1417
      %v1438 = vpack.c.b16 %v1420, %v1419
      %v1439 = vpack.c.b16 %v1422, %v1421
      %v1440 = vpack.c.b16 %v1424, %v1423
      %1441 = vrot.lane.b32.xlu0 %v1425, 64
      %v1442 = vpop.permute.xlu0 %1441
      %1443 = vrot.lane.b32.xlu0 %v1426, 64
      %v1444 = vpop.permute.xlu0 %1443
      %1445 = vrot.lane.b32.xlu0 %v1427, 64
      %v1446 = vpop.permute.xlu0 %1445
      %1447 = vrot.lane.b32.xlu0 %v1428, 64
      %v1448 = vpop.permute.xlu0 %1447
      %1449 = vrot.lane.b32.xlu0 %v1429, 64
      %v1450 = vpop.permute.xlu0 %1449
      %1451 = vrot.lane.b32.xlu0 %v1430, 64
      %v1452 = vpop.permute.xlu0 %1451
      %1453 = vrot.lane.b32.xlu0 %v1431, 64
      %v1454 = vpop.permute.xlu0 %1453
      %1455 = vrot.lane.b32.xlu0 %v1432, 64
      %v1456 = vpop.permute.xlu0 %1455
      %1457 = vrot.lane.b32.xlu0 %v1433, 64
      %v1458 = vpop.permute.xlu0 %1457
      %1459 = vrot.lane.b32.xlu0 %v1434, 64
      %v1460 = vpop.permute.xlu0 %1459
      %1461 = vrot.lane.b32.xlu0 %v1435, 64
      %v1462 = vpop.permute.xlu0 %1461
      %1463 = vrot.lane.b32.xlu0 %v1436, 64
      %v1464 = vpop.permute.xlu0 %1463
      %1465 = vrot.lane.b32.xlu0 %v1437, 64
      %v1466 = vpop.permute.xlu0 %1465
      %1467 = vrot.lane.b32.xlu0 %v1438, 64
      %v1468 = vpop.permute.xlu0 %1467
      %1469 = vrot.lane.b32.xlu0 %v1439, 64
      %v1470 = vpop.permute.xlu0 %1469
      %1471 = vrot.lane.b32.xlu0 %v1440, 64
      %v1472 = vpop.permute.xlu0 %1471
      %v1489 = vunpack.c.l.b16 %v367
      %v1490 = vunpack.c.l.b16 %v368
      %v1491 = vunpack.c.l.b16 %v369
      %v1492 = vunpack.c.l.b16 %v370
      %v1493 = vunpack.c.l.b16 %v371
      %v1494 = vunpack.c.l.b16 %v372
      %v1495 = vunpack.c.l.b16 %v373
      %v1496 = vunpack.c.l.b16 %v374
      %v1497 = vunpack.c.l.b16 %v375
      %v1498 = vunpack.c.l.b16 %v376
      %v1499 = vunpack.c.l.b16 %v377
      %v1500 = vunpack.c.l.b16 %v378
      %v1501 = vunpack.c.l.b16 %v379
      %v1502 = vunpack.c.l.b16 %v380
      %v1503 = vunpack.c.l.b16 %v381
      %v1504 = vunpack.c.l.b16 %v382
      %v1505 = vpack.c.b16 %v1489, %v1489
      %v1506 = vpack.c.b16 %v1490, %v1490
      %v1507 = vpack.c.b16 %v1491, %v1491
      %v1508 = vpack.c.b16 %v1492, %v1492
      %v1509 = vpack.c.b16 %v1493, %v1493
      %v1510 = vpack.c.b16 %v1494, %v1494
      %v1511 = vpack.c.b16 %v1495, %v1495
      %v1512 = vpack.c.b16 %v1496, %v1496
      %v1513 = vpack.c.b16 %v1497, %v1497
      %v1514 = vpack.c.b16 %v1498, %v1498
      %v1515 = vpack.c.b16 %v1499, %v1499
      %v1516 = vpack.c.b16 %v1500, %v1500
      %v1517 = vpack.c.b16 %v1501, %v1501
      %v1518 = vpack.c.b16 %v1502, %v1502
      %v1519 = vpack.c.b16 %v1503, %v1503
      %v1520 = vpack.c.b16 %v1504, %v1504
      %v1522 = vshrl.u32 %v1425, 16
      %v1524 = vshll.u32 %v1425, 16
      %v1526 = vrot.slane %v1524, 1
      %v1527 = vor.u32 %v1522, %v1526
      %v1529 = vshll.u32 %v1505, 16
      %v1531 = vrot.slane %v1529, 1
      %v1532 = vsel %vm527, %v1527, %v1531
      %v1534 = vshrl.u32 %v1426, 16
      %v1536 = vshll.u32 %v1426, 16
      %v1538 = vrot.slane %v1536, 1
      %v1539 = vor.u32 %v1534, %v1538
      %v1541 = vshll.u32 %v1506, 16
      %v1543 = vrot.slane %v1541, 1
      %v1544 = vsel %vm527, %v1539, %v1543
      %v1546 = vshrl.u32 %v1427, 16
      %v1548 = vshll.u32 %v1427, 16
      %v1550 = vrot.slane %v1548, 1
      %v1551 = vor.u32 %v1546, %v1550
      %v1553 = vshll.u32 %v1507, 16
      %v1555 = vrot.slane %v1553, 1
      %v1556 = vsel %vm527, %v1551, %v1555
      %v1558 = vshrl.u32 %v1428, 16
      %v1560 = vshll.u32 %v1428, 16
      %v1562 = vrot.slane %v1560, 1
      %v1563 = vor.u32 %v1558, %v1562
      %v1565 = vshll.u32 %v1508, 16
      %v1567 = vrot.slane %v1565, 1
      %v1568 = vsel %vm527, %v1563, %v1567
      %v1570 = vshrl.u32 %v1429, 16
      %v1572 = vshll.u32 %v1429, 16
      %v1574 = vrot.slane %v1572, 1
      %v1575 = vor.u32 %v1570, %v1574
      %v1577 = vshll.u32 %v1509, 16
      %v1579 = vrot.slane %v1577, 1
      %v1580 = vsel %vm527, %v1575, %v1579
      %v1582 = vshrl.u32 %v1430, 16
      %v1584 = vshll.u32 %v1430, 16
      %v1586 = vrot.slane %v1584, 1
      %v1587 = vor.u32 %v1582, %v1586
      %v1589 = vshll.u32 %v1510, 16
      %v1591 = vrot.slane %v1589, 1
      %v1592 = vsel %vm527, %v1587, %v1591
      %v1594 = vshrl.u32 %v1431, 16
      %v1596 = vshll.u32 %v1431, 16
      %v1598 = vrot.slane %v1596, 1
      %v1599 = vor.u32 %v1594, %v1598
      %v1601 = vshll.u32 %v1511, 16
      %v1603 = vrot.slane %v1601, 1
      %v1604 = vsel %vm527, %v1599, %v1603
      %v1606 = vshrl.u32 %v1432, 16
      %v1608 = vshll.u32 %v1432, 16
      %v1610 = vrot.slane %v1608, 1
      %v1611 = vor.u32 %v1606, %v1610
      %v1613 = vshll.u32 %v1512, 16
      %v1615 = vrot.slane %v1613, 1
      %v1616 = vsel %vm527, %v1611, %v1615
      %v1618 = vshrl.u32 %v1433, 16
      %v1620 = vshll.u32 %v1433, 16
      %v1622 = vrot.slane %v1620, 1
      %v1623 = vor.u32 %v1618, %v1622
      %v1625 = vshll.u32 %v1513, 16
      %v1627 = vrot.slane %v1625, 1
      %v1628 = vsel %vm527, %v1623, %v1627
      %v1630 = vshrl.u32 %v1434, 16
      %v1632 = vshll.u32 %v1434, 16
      %v1634 = vrot.slane %v1632, 1
      %v1635 = vor.u32 %v1630, %v1634
      %v1637 = vshll.u32 %v1514, 16
      %v1639 = vrot.slane %v1637, 1
      %v1640 = vsel %vm527, %v1635, %v1639
      %v1642 = vshrl.u32 %v1435, 16
      %v1644 = vshll.u32 %v1435, 16
      %v1646 = vrot.slane %v1644, 1
      %v1647 = vor.u32 %v1642, %v1646
      %v1649 = vshll.u32 %v1515, 16
      %v1651 = vrot.slane %v1649, 1
      %v1652 = vsel %vm527, %v1647, %v1651
      %v1654 = vshrl.u32 %v1436, 16
      %v1656 = vshll.u32 %v1436, 16
      %v1658 = vrot.slane %v1656, 1
      %v1659 = vor.u32 %v1654, %v1658
      %v1661 = vshll.u32 %v1516, 16
      %v1663 = vrot.slane %v1661, 1
      %v1664 = vsel %vm527, %v1659, %v1663
      %v1666 = vshrl.u32 %v1437, 16
      %v1668 = vshll.u32 %v1437, 16
      %v1670 = vrot.slane %v1668, 1
      %v1671 = vor.u32 %v1666, %v1670
      %v1673 = vshll.u32 %v1517, 16
      %v1675 = vrot.slane %v1673, 1
      %v1676 = vsel %vm527, %v1671, %v1675
      %v1678 = vshrl.u32 %v1438, 16
      %v1680 = vshll.u32 %v1438, 16
      %v1682 = vrot.slane %v1680, 1
      %v1683 = vor.u32 %v1678, %v1682
      %v1685 = vshll.u32 %v1518, 16
      %v1687 = vrot.slane %v1685, 1
      %v1688 = vsel %vm527, %v1683, %v1687
      %v1690 = vshrl.u32 %v1439, 16
      %v1692 = vshll.u32 %v1439, 16
      %v1694 = vrot.slane %v1692, 1
      %v1695 = vor.u32 %v1690, %v1694
      %v1697 = vshll.u32 %v1519, 16
      %v1699 = vrot.slane %v1697, 1
      %v1700 = vsel %vm527, %v1695, %v1699
      %v1702 = vshrl.u32 %v1440, 16
      %v1704 = vshll.u32 %v1440, 16
      %v1706 = vrot.slane %v1704, 1
      %v1707 = vor.u32 %v1702, %v1706
      %v1709 = vshll.u32 %v1520, 16
      %v1711 = vrot.slane %v1709, 1
      %v1712 = vsel %vm527, %v1707, %v1711
      %1713 = vrot.lane.b32.xlu0 %v1532, 96
      %v1714 = vpop.permute.xlu0 %1713
      %1715 = vrot.lane.b32.xlu0 %v1544, 96
      %v1716 = vpop.permute.xlu0 %1715
      %1717 = vrot.lane.b32.xlu0 %v1556, 96
      %v1718 = vpop.permute.xlu0 %1717
      %1719 = vrot.lane.b32.xlu0 %v1568, 96
      %v1720 = vpop.permute.xlu0 %1719
      %1721 = vrot.lane.b32.xlu0 %v1580, 96
      %v1722 = vpop.permute.xlu0 %1721
      %1723 = vrot.lane.b32.xlu0 %v1592, 96
      %v1724 = vpop.permute.xlu0 %1723
      %1725 = vrot.lane.b32.xlu0 %v1604, 96
      %v1726 = vpop.permute.xlu0 %1725
      %1727 = vrot.lane.b32.xlu0 %v1616, 96
      %v1728 = vpop.permute.xlu0 %1727
      %1729 = vrot.lane.b32.xlu0 %v1628, 96
      %v1730 = vpop.permute.xlu0 %1729
      %1731 = vrot.lane.b32.xlu0 %v1640, 96
      %v1732 = vpop.permute.xlu0 %1731
      %1733 = vrot.lane.b32.xlu0 %v1652, 96
      %v1734 = vpop.permute.xlu0 %1733
      %1735 = vrot.lane.b32.xlu0 %v1664, 96
      %v1736 = vpop.permute.xlu0 %1735
      %1737 = vrot.lane.b32.xlu0 %v1676, 96
      %v1738 = vpop.permute.xlu0 %1737
      %1739 = vrot.lane.b32.xlu0 %v1688, 96
      %v1740 = vpop.permute.xlu0 %1739
      %1741 = vrot.lane.b32.xlu0 %v1700, 96
      %v1742 = vpop.permute.xlu0 %1741
      %1743 = vrot.lane.b32.xlu0 %v1712, 96
      %v1744 = vpop.permute.xlu0 %1743
      %v1761 = vunpack.c.l.b16 %v383
      %v1762 = vunpack.c.l.b16 %v384
      %v1763 = vunpack.c.l.b16 %v385
      %v1764 = vunpack.c.l.b16 %v386
      %v1765 = vunpack.c.l.b16 %v387
      %v1766 = vunpack.c.l.b16 %v388
      %v1767 = vunpack.c.l.b16 %v389
      %v1768 = vunpack.c.l.b16 %v390
      %v1769 = vunpack.c.l.b16 %v391
      %v1770 = vunpack.c.l.b16 %v392
      %v1771 = vunpack.c.l.b16 %v393
      %v1772 = vunpack.c.l.b16 %v394
      %v1773 = vunpack.c.l.b16 %v395
      %v1774 = vunpack.c.l.b16 %v396
      %v1775 = vunpack.c.l.b16 %v397
      %v1776 = vunpack.c.l.b16 %v398
      %v1777 = vpack.c.b16 %v1394, %v1761
      %v1778 = vpack.c.b16 %v1396, %v1762
      %v1779 = vpack.c.b16 %v1398, %v1763
      %v1780 = vpack.c.b16 %v1400, %v1764
      %v1781 = vpack.c.b16 %v1402, %v1765
      %v1782 = vpack.c.b16 %v1404, %v1766
      %v1783 = vpack.c.b16 %v1406, %v1767
      %v1784 = vpack.c.b16 %v1408, %v1768
      %v1785 = vpack.c.b16 %v1410, %v1769
      %v1786 = vpack.c.b16 %v1412, %v1770
      %v1787 = vpack.c.b16 %v1414, %v1771
      %v1788 = vpack.c.b16 %v1416, %v1772
      %v1789 = vpack.c.b16 %v1418, %v1773
      %v1790 = vpack.c.b16 %v1420, %v1774
      %v1791 = vpack.c.b16 %v1422, %v1775
      %v1792 = vpack.c.b16 %v1424, %v1776
      %v1793 = vrot.slane %v1777, 1
      %v1794 = vrot.slane %v1505, 1
      %v1795 = vsel %vm800, %v1793, %v1794
      %v1796 = vrot.slane %v1778, 1
      %v1797 = vrot.slane %v1506, 1
      %v1798 = vsel %vm800, %v1796, %v1797
      %v1799 = vrot.slane %v1779, 1
      %v1800 = vrot.slane %v1507, 1
      %v1801 = vsel %vm800, %v1799, %v1800
      %v1802 = vrot.slane %v1780, 1
      %v1803 = vrot.slane %v1508, 1
      %v1804 = vsel %vm800, %v1802, %v1803
      %v1805 = vrot.slane %v1781, 1
      %v1806 = vrot.slane %v1509, 1
      %v1807 = vsel %vm800, %v1805, %v1806
      %v1808 = vrot.slane %v1782, 1
      %v1809 = vrot.slane %v1510, 1
      %v1810 = vsel %vm800, %v1808, %v1809
      %v1811 = vrot.slane %v1783, 1
      %v1812 = vrot.slane %v1511, 1
      %v1813 = vsel %vm800, %v1811, %v1812
      %v1814 = vrot.slane %v1784, 1
      %v1815 = vrot.slane %v1512, 1
      %v1816 = vsel %vm800, %v1814, %v1815
      %v1817 = vrot.slane %v1785, 1
      %v1818 = vrot.slane %v1513, 1
      %v1819 = vsel %vm800, %v1817, %v1818
      %v1820 = vrot.slane %v1786, 1
      %v1821 = vrot.slane %v1514, 1
      %v1822 = vsel %vm800, %v1820, %v1821
      %v1823 = vrot.slane %v1787, 1
      %v1824 = vrot.slane %v1515, 1
      %v1825 = vsel %vm800, %v1823, %v1824
      %v1826 = vrot.slane %v1788, 1
      %v1827 = vrot.slane %v1516, 1
      %v1828 = vsel %vm800, %v1826, %v1827
      %v1829 = vrot.slane %v1789, 1
      %v1830 = vrot.slane %v1517, 1
      %v1831 = vsel %vm800, %v1829, %v1830
      %v1832 = vrot.slane %v1790, 1
      %v1833 = vrot.slane %v1518, 1
      %v1834 = vsel %vm800, %v1832, %v1833
      %v1835 = vrot.slane %v1791, 1
      %v1836 = vrot.slane %v1519, 1
      %v1837 = vsel %vm800, %v1835, %v1836
      %v1838 = vrot.slane %v1792, 1
      %v1839 = vrot.slane %v1520, 1
      %v1840 = vsel %vm800, %v1838, %v1839
      %vm1841 = vcmask 261120
      %v1843 = vsel %vm1841, %v463, %v721
      %v1845 = vsel %vm1841, %v464, %v723
      %v1847 = vsel %vm1841, %v465, %v725
      %v1849 = vsel %vm1841, %v466, %v727
      %v1851 = vsel %vm1841, %v467, %v729
      %v1853 = vsel %vm1841, %v468, %v731
      %v1855 = vsel %vm1841, %v469, %v733
      %v1857 = vsel %vm1841, %v470, %v735
      %v1859 = vsel %vm1841, %v471, %v737
      %v1861 = vsel %vm1841, %v472, %v739
      %v1863 = vsel %vm1841, %v473, %v741
      %v1865 = vsel %vm1841, %v474, %v743
      %v1867 = vsel %vm1841, %v475, %v745
      %v1869 = vsel %vm1841, %v476, %v747
      %v1871 = vsel %vm1841, %v477, %v749
      %v1873 = vsel %vm1841, %v478, %v751
      %vm1874 = vcmask 523264
      %v1876 = vsel %vm1874, %v1843, %v850
      %v1878 = vsel %vm1874, %v1845, %v852
      %v1880 = vsel %vm1874, %v1847, %v854
      %v1882 = vsel %vm1874, %v1849, %v856
      %v1884 = vsel %vm1874, %v1851, %v858
      %v1886 = vsel %vm1874, %v1853, %v860
      %v1888 = vsel %vm1874, %v1855, %v862
      %v1890 = vsel %vm1874, %v1857, %v864
      %v1892 = vsel %vm1874, %v1859, %v866
      %v1894 = vsel %vm1874, %v1861, %v868
      %v1896 = vsel %vm1874, %v1863, %v870
      %v1898 = vsel %vm1874, %v1865, %v872
      %v1900 = vsel %vm1874, %v1867, %v874
      %v1902 = vsel %vm1874, %v1869, %v876
      %v1904 = vsel %vm1874, %v1871, %v878
      %v1906 = vsel %vm1874, %v1873, %v880
      %vm1907 = vcmask 785408
      %v1909 = vsel %vm1907, %v1876, %v962
      %v1912 = vsel %vm1907, %v1878, %v964
      %v1915 = vsel %vm1907, %v1880, %v966
      %v1918 = vsel %vm1907, %v1882, %v968
      %v1921 = vsel %vm1907, %v1884, %v970
      %v1924 = vsel %vm1907, %v1886, %v972
      %v1927 = vsel %vm1907, %v1888, %v974
      %v1930 = vsel %vm1907, %v1890, %v976
      %v1933 = vsel %vm1907, %v1892, %v978
      %v1936 = vsel %vm1907, %v1894, %v980
      %v1939 = vsel %vm1907, %v1896, %v982
      %v1942 = vsel %vm1907, %v1898, %v984
      %v1945 = vsel %vm1907, %v1900, %v986
      %v1948 = vsel %vm1907, %v1902, %v988
      %v1951 = vsel %vm1907, %v1904, %v990
      %v1954 = vsel %vm1907, %v1906, %v992
      %v1958 = vsel %vm1841, %v1052, %v1330
      %v1961 = vsel %vm1841, %v1064, %v1332
      %v1964 = vsel %vm1841, %v1076, %v1334
      %v1967 = vsel %vm1841, %v1088, %v1336
      %v1970 = vsel %vm1841, %v1100, %v1338
      %v1973 = vsel %vm1841, %v1112, %v1340
      %v1976 = vsel %vm1841, %v1124, %v1342
      %v1979 = vsel %vm1841, %v1136, %v1344
      %v1982 = vsel %vm1841, %v1148, %v1346
      %v1985 = vsel %vm1841, %v1160, %v1348
      %v1988 = vsel %vm1841, %v1172, %v1350
      %v1991 = vsel %vm1841, %v1184, %v1352
      %v1994 = vsel %vm1841, %v1196, %v1354
      %v1997 = vsel %vm1841, %v1208, %v1356
      %v2000 = vsel %vm1841, %v1220, %v1358
      %v2003 = vsel %vm1841, %v1232, %v1360
      %v2005 = vsel %vm1874, %v1958, %v1442
      %v2007 = vsel %vm1874, %v1961, %v1444
      %v2009 = vsel %vm1874, %v1964, %v1446
      %v2011 = vsel %vm1874, %v1967, %v1448
      %v2013 = vsel %vm1874, %v1970, %v1450
      %v2015 = vsel %vm1874, %v1973, %v1452
      %v2017 = vsel %vm1874, %v1976, %v1454
      %v2019 = vsel %vm1874, %v1979, %v1456
      %v2021 = vsel %vm1874, %v1982, %v1458
      %v2023 = vsel %vm1874, %v1985, %v1460
      %v2025 = vsel %vm1874, %v1988, %v1462
      %v2027 = vsel %vm1874, %v1991, %v1464
      %v2029 = vsel %vm1874, %v1994, %v1466
      %v2031 = vsel %vm1874, %v1997, %v1468
      %v2033 = vsel %vm1874, %v2000, %v1470
      %v2035 = vsel %vm1874, %v2003, %v1472
      %v2037 = vsel %vm1907, %v2005, %v1714
      %v2040 = vsel %vm1907, %v2007, %v1716
      %v2043 = vsel %vm1907, %v2009, %v1718
      %v2046 = vsel %vm1907, %v2011, %v1720
      %v2049 = vsel %vm1907, %v2013, %v1722
      %v2052 = vsel %vm1907, %v2015, %v1724
      %v2055 = vsel %vm1907, %v2017, %v1726
      %v2058 = vsel %vm1907, %v2019, %v1728
      %v2061 = vsel %vm1907, %v2021, %v1730
      %v2064 = vsel %vm1907, %v2023, %v1732
      %v2067 = vsel %vm1907, %v2025, %v1734
      %v2070 = vsel %vm1907, %v2027, %v1736
      %v2073 = vsel %vm1907, %v2029, %v1738
      %v2076 = vsel %vm1907, %v2031, %v1740
      %v2079 = vsel %vm1907, %v2033, %v1742
      %v2082 = vsel %vm1907, %v2035, %v1744
      %v2084 = vld [vmem:[%s1] sm:$0xf]
      %v2085 = vld [vmem:[%s1 + $0x4] sm:$0xf]
      %v2086 = vld [vmem:[%s1 + $0x8] sm:$0xf]
      %v2087 = vld [vmem:[%s1 + $0xc] sm:$0xf]
      %v2088 = vld [vmem:[%s1 + $0x10] sm:$0xf]
      %v2089 = vld [vmem:[%s1 + $0x14] sm:$0xf]
      %v2090 = vld [vmem:[%s1 + $0x18] sm:$0xf]
      %v2091 = vld [vmem:[%s1 + $0x1c] sm:$0xf]
      %v2092 = vld [vmem:[%s1 + $0x20] sm:$0xf]
      %v2093 = vld [vmem:[%s1 + $0x24] sm:$0xf]
      %v2094 = vld [vmem:[%s1 + $0x28] sm:$0xf]
      %v2095 = vld [vmem:[%s1 + $0x2c] sm:$0xf]
      %v2096 = vld [vmem:[%s1 + $0x30] sm:$0xf]
      %v2097 = vld [vmem:[%s1 + $0x34] sm:$0xf]
      %v2098 = vld [vmem:[%s1 + $0x38] sm:$0xf]
      %v2099 = vld [vmem:[%s1 + $0x3c] sm:$0xf]
      %v2100 = vld [vmem:[%s1 + $0x40] sm:$0xf]
      %v2101 = vld [vmem:[%s1 + $0x44] sm:$0xf]
      %v2102 = vld [vmem:[%s1 + $0x48] sm:$0xf]
      %v2103 = vld [vmem:[%s1 + $0x4c] sm:$0xf]
      %v2104 = vld [vmem:[%s1 + $0x50] sm:$0xf]
      %v2105 = vld [vmem:[%s1 + $0x54] sm:$0xf]
      %v2106 = vld [vmem:[%s1 + $0x58] sm:$0xf]
      %v2107 = vld [vmem:[%s1 + $0x5c] sm:$0xf]
      %v2108 = vld [vmem:[%s1 + $0x60] sm:$0xf]
      %v2109 = vld [vmem:[%s1 + $0x64] sm:$0xf]
      %v2110 = vld [vmem:[%s1 + $0x68] sm:$0xf]
      %v2111 = vld [vmem:[%s1 + $0x6c] sm:$0xf]
      %v2112 = vld [vmem:[%s1 + $0x70] sm:$0xf]
      %v2113 = vld [vmem:[%s1 + $0x74] sm:$0xf]
      %v2114 = vld [vmem:[%s1 + $0x78] sm:$0xf]
      %v2115 = vld [vmem:[%s1 + $0x7c] sm:$0xf]
      %v2116 = vld [vmem:[%s1 + $0x80] sm:$0xf]
      %v2117 = vld [vmem:[%s1 + $0x84] sm:$0xf]
      %v2118 = vld [vmem:[%s1 + $0x88] sm:$0xf]
      %v2119 = vld [vmem:[%s1 + $0x8c] sm:$0xf]
      %v2120 = vld [vmem:[%s2] sm:$0x1]
      %v2122 = vlaneseq
      %v2123 = vshrl.u32 %v2122, 7
      %v2124 = vsub.s32 0, %v2123
      %v2125 = vrot.slane %v2120, %v2124
      %v2163 = vunpack.c.l.b16 %v2084
      %v2164 = vunpack.c.l.b16 %v2085
      %v2165 = vunpack.c.l.b16 %v2086
      %v2166 = vunpack.c.l.b16 %v2087
      %v2167 = vunpack.c.l.b16 %v2088
      %v2168 = vunpack.c.l.b16 %v2089
      %v2169 = vunpack.c.l.b16 %v2090
      %v2170 = vunpack.c.l.b16 %v2091
      %v2171 = vunpack.c.l.b16 %v2092
      %v2172 = vunpack.c.l.b16 %v2093
      %v2173 = vunpack.c.l.b16 %v2094
      %v2174 = vunpack.c.l.b16 %v2095
      %v2175 = vunpack.c.l.b16 %v2096
      %v2176 = vunpack.c.l.b16 %v2097
      %v2177 = vunpack.c.l.b16 %v2098
      %v2178 = vunpack.c.l.b16 %v2099
      %v2179 = vunpack.c.l.b16 %v2100
      %v2180 = vunpack.c.l.b16 %v2101
      %v2181 = vunpack.c.l.b16 %v2102
      %v2182 = vunpack.c.l.b16 %v2103
      %v2183 = vunpack.c.l.b16 %v2104
      %v2184 = vunpack.c.l.b16 %v2105
      %v2185 = vunpack.c.l.b16 %v2106
      %v2186 = vunpack.c.l.b16 %v2107
      %v2187 = vunpack.c.l.b16 %v2108
      %v2188 = vunpack.c.l.b16 %v2109
      %v2189 = vunpack.c.l.b16 %v2110
      %v2190 = vunpack.c.l.b16 %v2111
      %v2191 = vunpack.c.l.b16 %v2112
      %v2192 = vunpack.c.l.b16 %v2113
      %v2193 = vunpack.c.l.b16 %v2114
      %v2194 = vunpack.c.l.b16 %v2115
      %v2195 = vunpack.c.l.b16 %v2116
      %v2196 = vunpack.c.l.b16 %v2117
      %v2197 = vunpack.c.l.b16 %v2118
      %v2198 = vunpack.c.l.b16 %v2119
      %v2199 = vpack.c.b16 %v2164, %v2163
      %v2200 = vpack.c.b16 %v2166, %v2165
      %v2201 = vpack.c.b16 %v2168, %v2167
      %v2202 = vpack.c.b16 %v2170, %v2169
      %v2203 = vpack.c.b16 %v2172, %v2171
      %v2204 = vpack.c.b16 %v2174, %v2173
      %v2205 = vpack.c.b16 %v2176, %v2175
      %v2206 = vpack.c.b16 %v2178, %v2177
      %v2207 = vpack.c.b16 %v2180, %v2179
      %v2208 = vpack.c.b16 %v2182, %v2181
      %v2209 = vpack.c.b16 %v2184, %v2183
      %v2210 = vpack.c.b16 %v2186, %v2185
      %v2211 = vpack.c.b16 %v2188, %v2187
      %v2212 = vpack.c.b16 %v2190, %v2189
      %v2213 = vpack.c.b16 %v2192, %v2191
      %v2214 = vpack.c.b16 %v2194, %v2193
      %v2215 = vpack.c.b16 %v2196, %v2195
      %v2216 = vpack.c.b16 %v2198, %v2197
      %v2236 = vsel %vm1841, %v1795, 0
      %v2239 = vsel %vm1841, %v1798, 0
      %v2242 = vsel %vm1841, %v1801, 0
      %v2245 = vsel %vm1841, %v1804, 0
      %v2248 = vsel %vm1841, %v1807, 0
      %v2251 = vsel %vm1841, %v1810, 0
      %v2254 = vsel %vm1841, %v1813, 0
      %v2257 = vsel %vm1841, %v1816, 0
      %v2260 = vsel %vm1841, %v1819, 0
      %v2263 = vsel %vm1841, %v1822, 0
      %v2266 = vsel %vm1841, %v1825, 0
      %v2269 = vsel %vm1841, %v1828, 0
      %v2272 = vsel %vm1841, %v1831, 0
      %v2275 = vsel %vm1841, %v1834, 0
      %v2278 = vsel %vm1841, %v1837, 0
      %v2281 = vsel %vm1841, %v1840, 0
      %2283 = vmatprep.subr.bf16.mxu0 0
      %2284 = vmatpush1.bf16.msra.mxu0 %v2206
      %2285 = vmatprep.subr.bf16.mxu0 0
      %2286 = vmatpush1.bf16.msra.mxu0 %v2205
      %2287 = vmatprep.subr.bf16.mxu0 0
      %2288 = vmatpush1.bf16.msra.mxu0 %v2204
      %2289 = vmatprep.subr.bf16.mxu0 0
      %2290 = vmatpush1.bf16.msra.mxu0 %v2203
      %2291 = vmatprep.subr.bf16.mxu0 0
      %2292 = vmatpush1.bf16.msra.mxu0 %v2202
      %2293 = vmatprep.subr.bf16.mxu0 0
      %2294 = vmatpush1.bf16.msra.mxu0 %v2201
      %2295 = vmatprep.subr.bf16.mxu0 0
      %2296 = vmatpush1.bf16.msra.mxu0 %v2200
      %2297 = vmatprep.subr.bf16.mxu0 0
      %2298 = vmatpush1.bf16.msra.mxu0 %v2199
      %2299 = vmatprep.subr.bf16.mxu0 0
      %2300 = vmatpush2.bf16.msra.mxu0 %v2214
      %2301 = vmatprep.subr.bf16.mxu0 0
      %2302 = vmatpush2.bf16.msra.mxu0 %v2213
      %2303 = vmatprep.subr.bf16.mxu0 0
      %2304 = vmatpush2.bf16.msra.mxu0 %v2212
      %2305 = vmatprep.subr.bf16.mxu0 0
      %2306 = vmatpush2.bf16.msra.mxu0 %v2211
      %2307 = vmatprep.subr.bf16.mxu0 0
      %2308 = vmatpush2.bf16.msra.mxu0 %v2210
      %2309 = vmatprep.subr.bf16.mxu0 0
      %2310 = vmatpush2.bf16.msra.mxu0 %v2209
      %2311 = vmatprep.subr.bf16.mxu0 0
      %2312 = vmatpush2.bf16.msra.mxu0 %v2208
      %2313 = vmatprep.subr.bf16.mxu0 0
      %2314 = vmatpush2.bf16.msra.mxu0 %v2207
      %2315 = vmatprep.mubr.bf16.mxu0 %v2037
      %2316 = vmatmul.mubr.bf16.gmra.mxu0 %v1909
      %v2317 = vpop.f32.mrf.mxu0
      %v2318 = vadd.f32 %v2125, %v2317
      %v2319 = vpop.f32.mrf.mxu0
      %v2320 = vpop.f32.mrf.mxu0
      %v2321 = vadd.f32 %v2125, %v2320
      %v2322 = vpop.f32.mrf.mxu0
      %2323 = vmatprep.mubr.bf16.mxu0 %v2040
      %2324 = vmatmul.mubr.bf16.gmra.mxu0 %v1912
      %v2325 = vpop.f32.mrf.mxu0
      %v2326 = vadd.f32 %v2125, %v2325
      %v2327 = vpop.f32.mrf.mxu0
      %v2328 = vpop.f32.mrf.mxu0
      %v2329 = vadd.f32 %v2125, %v2328
      %v2330 = vpop.f32.mrf.mxu0
      %2331 = vmatprep.mubr.bf16.mxu0 %v2043
      %2332 = vmatmul.mubr.bf16.gmra.mxu0 %v1915
      %v2333 = vpop.f32.mrf.mxu0
      %v2334 = vadd.f32 %v2125, %v2333
      %v2335 = vpop.f32.mrf.mxu0
      %v2336 = vpop.f32.mrf.mxu0
      %v2337 = vadd.f32 %v2125, %v2336
      %v2338 = vpop.f32.mrf.mxu0
      %2339 = vmatprep.mubr.bf16.mxu0 %v2046
      %2340 = vmatmul.mubr.bf16.gmra.mxu0 %v1918
      %v2341 = vpop.f32.mrf.mxu0
      %v2342 = vadd.f32 %v2125, %v2341
      %v2343 = vpop.f32.mrf.mxu0
      %v2344 = vpop.f32.mrf.mxu0
      %v2345 = vadd.f32 %v2125, %v2344
      %v2346 = vpop.f32.mrf.mxu0
      %2347 = vmatprep.mubr.bf16.mxu0 %v2049
      %2348 = vmatmul.mubr.bf16.gmra.mxu0 %v1921
      %v2349 = vpop.f32.mrf.mxu0
      %v2350 = vadd.f32 %v2125, %v2349
      %v2351 = vpop.f32.mrf.mxu0
      %v2352 = vpop.f32.mrf.mxu0
      %v2353 = vadd.f32 %v2125, %v2352
      %v2354 = vpop.f32.mrf.mxu0
      %2355 = vmatprep.mubr.bf16.mxu0 %v2052
      %2356 = vmatmul.mubr.bf16.gmra.mxu0 %v1924
      %v2357 = vpop.f32.mrf.mxu0
      %v2358 = vadd.f32 %v2125, %v2357
      %v2359 = vpop.f32.mrf.mxu0
      %v2360 = vpop.f32.mrf.mxu0
      %v2361 = vadd.f32 %v2125, %v2360
      %v2362 = vpop.f32.mrf.mxu0
      %2363 = vmatprep.mubr.bf16.mxu0 %v2055
      %2364 = vmatmul.mubr.bf16.gmra.mxu0 %v1927
      %v2365 = vpop.f32.mrf.mxu0
      %v2366 = vadd.f32 %v2125, %v2365
      %v2367 = vpop.f32.mrf.mxu0
      %v2368 = vpop.f32.mrf.mxu0
      %v2369 = vadd.f32 %v2125, %v2368
      %v2370 = vpop.f32.mrf.mxu0
      %2371 = vmatprep.mubr.bf16.mxu0 %v2058
      %2372 = vmatmul.mubr.bf16.gmra.mxu0 %v1930
      %v2373 = vpop.f32.mrf.mxu0
      %v2374 = vadd.f32 %v2125, %v2373
      %v2375 = vpop.f32.mrf.mxu0
      %v2376 = vpop.f32.mrf.mxu0
      %v2377 = vadd.f32 %v2125, %v2376
      %v2378 = vpop.f32.mrf.mxu0
      %2379 = vmatprep.mubr.bf16.mxu0 %v2061
      %2380 = vmatmul.mubr.bf16.gmra.mxu0 %v1933
      %v2381 = vpop.f32.mrf.mxu0
      %v2382 = vadd.f32 %v2125, %v2381
      %v2383 = vpop.f32.mrf.mxu0
      %v2384 = vpop.f32.mrf.mxu0
      %v2385 = vadd.f32 %v2125, %v2384
      %v2386 = vpop.f32.mrf.mxu0
      %2387 = vmatprep.mubr.bf16.mxu0 %v2064
      %2388 = vmatmul.mubr.bf16.gmra.mxu0 %v1936
      %v2389 = vpop.f32.mrf.mxu0
      %v2390 = vadd.f32 %v2125, %v2389
      %v2391 = vpop.f32.mrf.mxu0
      %v2392 = vpop.f32.mrf.mxu0
      %v2393 = vadd.f32 %v2125, %v2392
      %v2394 = vpop.f32.mrf.mxu0
      %2395 = vmatprep.mubr.bf16.mxu0 %v2067
      %2396 = vmatmul.mubr.bf16.gmra.mxu0 %v1939
      %v2397 = vpop.f32.mrf.mxu0
      %v2398 = vadd.f32 %v2125, %v2397
      %v2399 = vpop.f32.mrf.mxu0
      %v2400 = vpop.f32.mrf.mxu0
      %v2401 = vadd.f32 %v2125, %v2400
      %v2402 = vpop.f32.mrf.mxu0
      %2403 = vmatprep.mubr.bf16.mxu0 %v2070
      %2404 = vmatmul.mubr.bf16.gmra.mxu0 %v1942
      %v2405 = vpop.f32.mrf.mxu0
      %v2406 = vadd.f32 %v2125, %v2405
      %v2407 = vpop.f32.mrf.mxu0
      %v2408 = vpop.f32.mrf.mxu0
      %v2409 = vadd.f32 %v2125, %v2408
      %v2410 = vpop.f32.mrf.mxu0
      %2411 = vmatprep.mubr.bf16.mxu0 %v2073
      %2412 = vmatmul.mubr.bf16.gmra.mxu0 %v1945
      %v2413 = vpop.f32.mrf.mxu0
      %v2414 = vadd.f32 %v2125, %v2413
      %v2415 = vpop.f32.mrf.mxu0
      %v2416 = vpop.f32.mrf.mxu0
      %v2417 = vadd.f32 %v2125, %v2416
      %v2418 = vpop.f32.mrf.mxu0
      %2419 = vmatprep.mubr.bf16.mxu0 %v2076
      %2420 = vmatmul.mubr.bf16.gmra.mxu0 %v1948
      %v2421 = vpop.f32.mrf.mxu0
      %v2422 = vadd.f32 %v2125, %v2421
      %v2423 = vpop.f32.mrf.mxu0
      %v2424 = vpop.f32.mrf.mxu0
      %v2425 = vadd.f32 %v2125, %v2424
      %v2426 = vpop.f32.mrf.mxu0
      %2427 = vmatprep.mubr.bf16.mxu0 %v2079
      %2428 = vmatmul.mubr.bf16.gmra.mxu0 %v1951
      %v2429 = vpop.f32.mrf.mxu0
      %v2430 = vadd.f32 %v2125, %v2429
      %v2431 = vpop.f32.mrf.mxu0
      %v2432 = vpop.f32.mrf.mxu0
      %v2433 = vadd.f32 %v2125, %v2432
      %v2434 = vpop.f32.mrf.mxu0
      %2435 = vmatprep.mubr.bf16.mxu0 %v2082
      %2436 = vmatmul.mubr.bf16.gmra.mxu0 %v1954
      %v2437 = vpop.f32.mrf.mxu0
      %v2438 = vadd.f32 %v2125, %v2437
      %v2439 = vpop.f32.mrf.mxu0
      %v2440 = vpop.f32.mrf.mxu0
      %v2441 = vadd.f32 %v2125, %v2440
      %v2442 = vpop.f32.mrf.mxu0
      %2443 = vdwg.mxu0
      %2444 = vmatprep.subr.bf16.mxu0 0
      %2445 = vmatpush1.bf16.msra.mxu0 0
      %2446 = vmatprep.subr.bf16.mxu0 0
      %2447 = vmatpush1.bf16.msra.mxu0 0
      %2448 = vmatprep.subr.bf16.mxu0 0
      %2449 = vmatpush1.bf16.msra.mxu0 0
      %2450 = vmatprep.subr.bf16.mxu0 0
      %2451 = vmatpush1.bf16.msra.mxu0 0
      %2452 = vmatprep.subr.bf16.mxu0 0
      %2453 = vmatpush1.bf16.msra.mxu0 0
      %2454 = vmatprep.subr.bf16.mxu0 0
      %2455 = vmatpush1.bf16.msra.mxu0 0
      %2456 = vmatprep.subr.bf16.mxu0 0
      %2457 = vmatpush1.bf16.msra.mxu0 %v2216
      %2458 = vmatprep.subr.bf16.mxu0 0
      %2459 = vmatpush1.bf16.msra.mxu0 %v2215
      %2460 = vmatprep.subr.bf16.mxu0 0
      %2461 = vmatpush2.bf16.msra.mxu0 0
      %2462 = vmatprep.subr.bf16.mxu0 0
      %2463 = vmatpush2.bf16.msra.mxu0 0
      %2464 = vmatprep.subr.bf16.mxu0 0
      %2465 = vmatpush2.bf16.msra.mxu0 0
      %2466 = vmatprep.subr.bf16.mxu0 0
      %2467 = vmatpush2.bf16.msra.mxu0 0
      %2468 = vmatprep.subr.bf16.mxu0 0
      %2469 = vmatpush2.bf16.msra.mxu0 0
      %2470 = vmatprep.subr.bf16.mxu0 0
      %2471 = vmatpush2.bf16.msra.mxu0 0
      %2472 = vmatprep.subr.bf16.mxu0 0
      %2473 = vmatpush2.bf16.msra.mxu0 0
      %2474 = vmatprep.subr.bf16.mxu0 0
      %2475 = vmatpush2.bf16.msra.mxu0 0
      %2476 = vmatprep.mubr.bf16.mxu0 0
      %2477 = vmatmul.mubr.bf16.gmra.mxu0 %v2236
      %v2478 = vpop.f32.mrf.mxu0
      %v2479 = vadd.f32 %v2318, %v2478
      %v2480 = vpop.f32.mrf.mxu0
      %v2481 = vpop.f32.mrf.mxu0
      %v2482 = vadd.f32 %v2321, %v2481
      %v2483 = vpop.f32.mrf.mxu0
      %2484 = vmatprep.mubr.bf16.mxu0 0
      %2485 = vmatmul.mubr.bf16.gmra.mxu0 %v2239
      %v2486 = vpop.f32.mrf.mxu0
      %v2487 = vadd.f32 %v2326, %v2486
      %v2488 = vpop.f32.mrf.mxu0
      %v2489 = vpop.f32.mrf.mxu0
      %v2490 = vadd.f32 %v2329, %v2489
      %v2491 = vpop.f32.mrf.mxu0
      %2492 = vmatprep.mubr.bf16.mxu0 0
      %2493 = vmatmul.mubr.bf16.gmra.mxu0 %v2242
      %v2494 = vpop.f32.mrf.mxu0
      %v2495 = vadd.f32 %v2334, %v2494
      %v2496 = vpop.f32.mrf.mxu0
      %v2497 = vpop.f32.mrf.mxu0
      %v2498 = vadd.f32 %v2337, %v2497
      %v2499 = vpop.f32.mrf.mxu0
      %2500 = vmatprep.mubr.bf16.mxu0 0
      %2501 = vmatmul.mubr.bf16.gmra.mxu0 %v2245
      %v2502 = vpop.f32.mrf.mxu0
      %v2503 = vadd.f32 %v2342, %v2502
      %v2504 = vpop.f32.mrf.mxu0
      %v2505 = vpop.f32.mrf.mxu0
      %v2506 = vadd.f32 %v2345, %v2505
      %v2507 = vpop.f32.mrf.mxu0
      %2508 = vmatprep.mubr.bf16.mxu0 0
      %2509 = vmatmul.mubr.bf16.gmra.mxu0 %v2248
      %v2510 = vpop.f32.mrf.mxu0
      %v2511 = vadd.f32 %v2350, %v2510
      %v2512 = vpop.f32.mrf.mxu0
      %v2513 = vpop.f32.mrf.mxu0
      %v2514 = vadd.f32 %v2353, %v2513
      %v2515 = vpop.f32.mrf.mxu0
      %2516 = vmatprep.mubr.bf16.mxu0 0
      %2517 = vmatmul.mubr.bf16.gmra.mxu0 %v2251
      %v2518 = vpop.f32.mrf.mxu0
      %v2519 = vadd.f32 %v2358, %v2518
      %v2520 = vpop.f32.mrf.mxu0
      %v2521 = vpop.f32.mrf.mxu0
      %v2522 = vadd.f32 %v2361, %v2521
      %v2523 = vpop.f32.mrf.mxu0
      %2524 = vmatprep.mubr.bf16.mxu0 0
      %2525 = vmatmul.mubr.bf16.gmra.mxu0 %v2254
      %v2526 = vpop.f32.mrf.mxu0
      %v2527 = vadd.f32 %v2366, %v2526
      %v2528 = vpop.f32.mrf.mxu0
      %v2529 = vpop.f32.mrf.mxu0
      %v2530 = vadd.f32 %v2369, %v2529
      %v2531 = vpop.f32.mrf.mxu0
      %2532 = vmatprep.mubr.bf16.mxu0 0
      %2533 = vmatmul.mubr.bf16.gmra.mxu0 %v2257
      %v2534 = vpop.f32.mrf.mxu0
      %v2535 = vadd.f32 %v2374, %v2534
      %v2536 = vpop.f32.mrf.mxu0
      %v2537 = vpop.f32.mrf.mxu0
      %v2538 = vadd.f32 %v2377, %v2537
      %v2539 = vpop.f32.mrf.mxu0
      %2540 = vmatprep.mubr.bf16.mxu0 0
      %2541 = vmatmul.mubr.bf16.gmra.mxu0 %v2260
      %v2542 = vpop.f32.mrf.mxu0
      %v2543 = vadd.f32 %v2382, %v2542
      %v2544 = vpop.f32.mrf.mxu0
      %v2545 = vpop.f32.mrf.mxu0
      %v2546 = vadd.f32 %v2385, %v2545
      %v2547 = vpop.f32.mrf.mxu0
      %2548 = vmatprep.mubr.bf16.mxu0 0
      %2549 = vmatmul.mubr.bf16.gmra.mxu0 %v2263
      %v2550 = vpop.f32.mrf.mxu0
      %v2551 = vadd.f32 %v2390, %v2550
      %v2552 = vpop.f32.mrf.mxu0
      %v2553 = vpop.f32.mrf.mxu0
      %v2554 = vadd.f32 %v2393, %v2553
      %v2555 = vpop.f32.mrf.mxu0
      %2556 = vmatprep.mubr.bf16.mxu0 0
      %2557 = vmatmul.mubr.bf16.gmra.mxu0 %v2266
      %v2558 = vpop.f32.mrf.mxu0
      %v2559 = vadd.f32 %v2398, %v2558
      %v2560 = vpop.f32.mrf.mxu0
      %v2561 = vpop.f32.mrf.mxu0
      %v2562 = vadd.f32 %v2401, %v2561
      %v2563 = vpop.f32.mrf.mxu0
      %2564 = vmatprep.mubr.bf16.mxu0 0
      %2565 = vmatmul.mubr.bf16.gmra.mxu0 %v2269
      %v2566 = vpop.f32.mrf.mxu0
      %v2567 = vadd.f32 %v2406, %v2566
      %v2568 = vpop.f32.mrf.mxu0
      %v2569 = vpop.f32.mrf.mxu0
      %v2570 = vadd.f32 %v2409, %v2569
      %v2571 = vpop.f32.mrf.mxu0
      %2572 = vmatprep.mubr.bf16.mxu0 0
      %2573 = vmatmul.mubr.bf16.gmra.mxu0 %v2272
      %v2574 = vpop.f32.mrf.mxu0
      %v2575 = vadd.f32 %v2414, %v2574
      %v2576 = vpop.f32.mrf.mxu0
      %v2577 = vpop.f32.mrf.mxu0
      %v2578 = vadd.f32 %v2417, %v2577
      %v2579 = vpop.f32.mrf.mxu0
      %2580 = vmatprep.mubr.bf16.mxu0 0
      %2581 = vmatmul.mubr.bf16.gmra.mxu0 %v2275
      %v2582 = vpop.f32.mrf.mxu0
      %v2583 = vadd.f32 %v2422, %v2582
      %v2584 = vpop.f32.mrf.mxu0
      %v2585 = vpop.f32.mrf.mxu0
      %v2586 = vadd.f32 %v2425, %v2585
      %v2587 = vpop.f32.mrf.mxu0
      %2588 = vmatprep.mubr.bf16.mxu0 0
      %2589 = vmatmul.mubr.bf16.gmra.mxu0 %v2278
      %v2590 = vpop.f32.mrf.mxu0
      %v2591 = vadd.f32 %v2430, %v2590
      %v2592 = vpop.f32.mrf.mxu0
      %v2593 = vpop.f32.mrf.mxu0
      %v2594 = vadd.f32 %v2433, %v2593
      %v2595 = vpop.f32.mrf.mxu0
      %2596 = vmatprep.mubr.bf16.mxu0 0
      %2597 = vmatmul.mubr.bf16.gmra.mxu0 %v2281
      %v2598 = vpop.f32.mrf.mxu0
      %v2599 = vadd.f32 %v2438, %v2598
      %v2600 = vpop.f32.mrf.mxu0
      %v2601 = vpop.f32.mrf.mxu0
      %v2602 = vadd.f32 %v2441, %v2601
      %v2603 = vpop.f32.mrf.mxu0
      %2604 = vdwg.mxu0
      %v2605 = vpack.c.bf16 %v2482, %v2479
      %v2606 = vpack.c.bf16 %v2490, %v2487
      %v2607 = vpack.c.bf16 %v2498, %v2495
      %v2608 = vpack.c.bf16 %v2506, %v2503
      %v2609 = vpack.c.bf16 %v2514, %v2511
      %v2610 = vpack.c.bf16 %v2522, %v2519
      %v2611 = vpack.c.bf16 %v2530, %v2527
      %v2612 = vpack.c.bf16 %v2538, %v2535
      %v2613 = vpack.c.bf16 %v2546, %v2543
      %v2614 = vpack.c.bf16 %v2554, %v2551
      %v2615 = vpack.c.bf16 %v2562, %v2559
      %v2616 = vpack.c.bf16 %v2570, %v2567
      %v2617 = vpack.c.bf16 %v2578, %v2575
      %v2618 = vpack.c.bf16 %v2586, %v2583
      %v2619 = vpack.c.bf16 %v2594, %v2591
      %v2620 = vpack.c.bf16 %v2602, %v2599
      %v2637 = vunpack.c.l.b16 %v2605
      %v2638 = vunpack.c.h.b16 %v2605
      %v2639 = vunpack.c.l.b16 %v2606
      %v2640 = vunpack.c.h.b16 %v2606
      %v2641 = vunpack.c.l.b16 %v2607
      %v2642 = vunpack.c.h.b16 %v2607
      %v2643 = vunpack.c.l.b16 %v2608
      %v2644 = vunpack.c.h.b16 %v2608
      %v2645 = vunpack.c.l.b16 %v2609
      %v2646 = vunpack.c.h.b16 %v2609
      %v2647 = vunpack.c.l.b16 %v2610
      %v2648 = vunpack.c.h.b16 %v2610
      %v2649 = vunpack.c.l.b16 %v2611
      %v2650 = vunpack.c.h.b16 %v2611
      %v2651 = vunpack.c.l.b16 %v2612
      %v2652 = vunpack.c.h.b16 %v2612
      %v2653 = vunpack.c.l.b16 %v2613
      %v2654 = vunpack.c.h.b16 %v2613
      %v2655 = vunpack.c.l.b16 %v2614
      %v2656 = vunpack.c.h.b16 %v2614
      %v2657 = vunpack.c.l.b16 %v2615
      %v2658 = vunpack.c.h.b16 %v2615
      %v2659 = vunpack.c.l.b16 %v2616
      %v2660 = vunpack.c.h.b16 %v2616
      %v2661 = vunpack.c.l.b16 %v2617
      %v2662 = vunpack.c.h.b16 %v2617
      %v2663 = vunpack.c.l.b16 %v2618
      %v2664 = vunpack.c.h.b16 %v2618
      %v2665 = vunpack.c.l.b16 %v2619
      %v2666 = vunpack.c.h.b16 %v2619
      %v2667 = vunpack.c.l.b16 %v2620
      %v2668 = vunpack.c.h.b16 %v2620
      %v2669 = vpack.c.b16 %v2637, %v2637
      %v2670 = vpack.c.b16 %v2638, %v2638
      %v2671 = vpack.c.b16 %v2639, %v2639
      %v2672 = vpack.c.b16 %v2640, %v2640
      %v2673 = vpack.c.b16 %v2641, %v2641
      %v2674 = vpack.c.b16 %v2642, %v2642
      %v2675 = vpack.c.b16 %v2643, %v2643
      %v2676 = vpack.c.b16 %v2644, %v2644
      %v2677 = vpack.c.b16 %v2645, %v2645
      %v2678 = vpack.c.b16 %v2646, %v2646
      %v2679 = vpack.c.b16 %v2647, %v2647
      %v2680 = vpack.c.b16 %v2648, %v2648
      %v2681 = vpack.c.b16 %v2649, %v2649
      %v2682 = vpack.c.b16 %v2650, %v2650
      %v2683 = vpack.c.b16 %v2651, %v2651
      %v2684 = vpack.c.b16 %v2652, %v2652
      %v2685 = vpack.c.b16 %v2653, %v2653
      %v2686 = vpack.c.b16 %v2654, %v2654
      %v2687 = vpack.c.b16 %v2655, %v2655
      %v2688 = vpack.c.b16 %v2656, %v2656
      %v2689 = vpack.c.b16 %v2657, %v2657
      %v2690 = vpack.c.b16 %v2658, %v2658
      %v2691 = vpack.c.b16 %v2659, %v2659
      %v2692 = vpack.c.b16 %v2660, %v2660
      %v2693 = vpack.c.b16 %v2661, %v2661
      %v2694 = vpack.c.b16 %v2662, %v2662
      %v2695 = vpack.c.b16 %v2663, %v2663
      %v2696 = vpack.c.b16 %v2664, %v2664
      %v2697 = vpack.c.b16 %v2665, %v2665
      %v2698 = vpack.c.b16 %v2666, %v2666
      %v2699 = vpack.c.b16 %v2667, %v2667
      %v2700 = vpack.c.b16 %v2668, %v2668
      %2733 = vst [vmem:[%s192] sm:$0xf] %v2669
      %2734 = vst [vmem:[%s192 + $0x4] sm:$0xf] %v2670
      %2735 = vst [vmem:[%s192 + $0x8] sm:$0xf] %v2671
      %2736 = vst [vmem:[%s192 + $0xc] sm:$0xf] %v2672
      %2737 = vst [vmem:[%s192 + $0x10] sm:$0xf] %v2673
      %2738 = vst [vmem:[%s192 + $0x14] sm:$0xf] %v2674
      %2739 = vst [vmem:[%s192 + $0x18] sm:$0xf] %v2675
      %2740 = vst [vmem:[%s192 + $0x1c] sm:$0xf] %v2676
      %2741 = vst [vmem:[%s192 + $0x20] sm:$0xf] %v2677
      %2742 = vst [vmem:[%s192 + $0x24] sm:$0xf] %v2678
      %2743 = vst [vmem:[%s192 + $0x28] sm:$0xf] %v2679
      %2744 = vst [vmem:[%s192 + $0x2c] sm:$0xf] %v2680
      %2745 = vst [vmem:[%s192 + $0x30] sm:$0xf] %v2681
      %2746 = vst [vmem:[%s192 + $0x34] sm:$0xf] %v2682
      %2747 = vst [vmem:[%s192 + $0x38] sm:$0xf] %v2683
      %2748 = vst [vmem:[%s192 + $0x3c] sm:$0xf] %v2684
      %2749 = vst [vmem:[%s192 + $0x40] sm:$0xf] %v2685
      %2750 = vst [vmem:[%s192 + $0x44] sm:$0xf] %v2686
      %2751 = vst [vmem:[%s192 + $0x48] sm:$0xf] %v2687
      %2752 = vst [vmem:[%s192 + $0x4c] sm:$0xf] %v2688
      %2753 = vst [vmem:[%s192 + $0x50] sm:$0xf] %v2689
      %2754 = vst [vmem:[%s192 + $0x54] sm:$0xf] %v2690
      %2755 = vst [vmem:[%s192 + $0x58] sm:$0xf] %v2691
      %2756 = vst [vmem:[%s192 + $0x5c] sm:$0xf] %v2692
      %2757 = vst [vmem:[%s192 + $0x60] sm:$0xf] %v2693
      %2758 = vst [vmem:[%s192 + $0x64] sm:$0xf] %v2694
      %2759 = vst [vmem:[%s192 + $0x68] sm:$0xf] %v2695
      %2760 = vst [vmem:[%s192 + $0x6c] sm:$0xf] %v2696
      %2761 = vst [vmem:[%s192 + $0x70] sm:$0xf] %v2697
      %2762 = vst [vmem:[%s192 + $0x74] sm:$0xf] %v2698
      %2763 = vst [vmem:[%s192 + $0x78] sm:$0xf] %v2699
      %2764 = vst [vmem:[%s192 + $0x7c] sm:$0xf] %v2700
      %s2765 = smul.u32 32, %s19
      %p2766 = scmp.lt.s32.totalorder %s18, 1
      %s2767 = scalar_select %p2766, %s18, 1
      %p2768 = scmp.lt.s32.totalorder %s2765, 31
      %s2769 = scalar_select %p2768, %s2765, 31
      %s2770 = smul.addr %s2767, 32
      %s2771 = sadd.s32 %s2769, %s2770
      %s2772 = smul.addr %s2771, 4
      %s2773 = scalar_lea.vmem %s3, %s2772
      // Predicated region
      $region33: #{depthwise_conv2d_forward.1} parent=31 // pred_check
        %p2774 = pneg %p114
      $region34: #{depthwise_conv2d_forward.1} parent=31 // pred_check_branch
        %2776 = sbr.rel (%p2774) target = $region36
      $region35: #{depthwise_conv2d_forward.1} parent=31 // pred_region
        %s2777 = smul.u32 32, %s19
      $region36: #{depthwise_conv2d_forward.1} parent=31 // pred_fallthru
        _
    $region32: #{depthwise_conv2d_forward.1} parent=5 // pred_fallthru
      _
    %p2778 = scmp.le.s32.totalorder 2, %s9
    // Predicated region
    $region37: #{depthwise_conv2d_forward.1} parent=5 // pred_check
      %p2779 = pneg %p2778
    $region38: #{depthwise_conv2d_forward.1} parent=5 // pred_check_branch
      %2781 = sbr.rel (%p2779) target = $region40
    $region39: #{depthwise_conv2d_forward.1} parent=5 // pred_region
      %s2782 = ssub.s32 %s9, 2
      // Predicated region
      $region41: #{depthwise_conv2d_forward.1} parent=39 // pred_check
        %p2783 = pneg %p120
      $region42: #{depthwise_conv2d_forward.1} parent=39 // pred_check_branch
        %2785 = sbr.rel (%p2783) target = $region44
      $region43: #{depthwise_conv2d_forward.1} parent=39 // pred_region
        %s2786 = smul.u32 32, %s21
        %p2787 = scmp.lt.s32.totalorder %s20, 1
        %s2788 = scalar_select %p2787, %s20, 1
        %p2789 = scmp.lt.s32.totalorder %s2786, 31
        %s2790 = scalar_select %p2789, %s2786, 31
        %s2791 = smul.addr %s2788, 32
        %s2792 = sadd.s32 %s2790, %s2791
        %s2793 = smul.addr %s2792, 4
        %s2794 = scalar_lea.vmem %s3, %s2793
      $region44: #{depthwise_conv2d_forward.1} parent=39 // pred_fallthru
        _
    $region40: #{depthwise_conv2d_forward.1} parent=5 // pred_fallthru
      _
  $region6: #{depthwise_conv2d_forward.1} parent=0 // loop_footer
    %s13 = sadd.s32 1, %s9
  $region7: #{depthwise_conv2d_forward.1} parent=0 // loop_footer_branch
    %8 = sbr.rel target = $region3
  $region8: #{depthwise_conv2d_forward.1} parent=0 // loop_exit
    _

</llo_original>
